<compile_context>
chip_gen: v6e
topology: v6e:2x2x1
jax: 0.10.0
libtpu: 0.0.40
codegen_flags: <defaults>
</compile_context>

<pallas_src>
import functools

import jax
import jax.numpy as jnp
from jax.experimental import pallas as pl
from jax.experimental.pallas import tpu as pltpu


def _round_up(x, m):
    return ((x + m - 1) // m) * m


def _ceil_div(a, b):
    return -(-a // b)


def _vmem_capacity_bytes():
    # Generation-aware physical VMEM (128 MiB on v5e/v6e, 64 MiB per-TC on v7x).
    try:
        return int(pltpu.get_tpu_info().vmem_capacity_bytes)
    except Exception:  # query unavailable -> conservative default
        return 64 * 1024 * 1024


def _mlp_kernel(x_ref, w1_ref, b1_ref, w2_ref, b2_ref, o_ref, acc_ref):
    """One (batch-tile, hidden-tile) grid step of the fused MLP.

    Grid: (batch tiles ["parallel"], hidden tiles ["arbitrary" reduction]).
    Per batch tile: zero the f32 accumulator on the first hidden tile,
    accumulate relu(x @ W1[:, ht] + b1[ht]) @ W2[ht, :] per hidden tile (both
    matmuls on the MXU, f32 accumulation), apply fc2 bias + ReLU on the last.
    """
    ht = pl.program_id(1)

    @pl.when(ht == 0)
    def _init():
        acc_ref[...] = jnp.zeros_like(acc_ref)

    h = jnp.dot(x_ref[...], w1_ref[...], preferred_element_type=jnp.float32)
    h = jnp.maximum(h + b1_ref[...], 0.0)                 # fc1 bias + ReLU (f32, VPU)
    acc_ref[...] += jnp.dot(h.astype(w2_ref.dtype), w2_ref[...],
                            preferred_element_type=jnp.float32)

    @pl.when(ht == pl.num_programs(1) - 1)
    def _finalize():
        o_ref[...] = jnp.maximum(acc_ref[...] + b2_ref[...], 0.0).astype(o_ref.dtype)


def prepare_mlp_params(w1, b1, w2, b2, compute_dtype=jnp.bfloat16):
    """Pad weights/biases to lane-dense 128-multiples ONCE (done at init time,
    not inside the jitted forward). Returns ((w1p,b1p,w2p,b2p), (d_in,H,d_out)).
    bf16 weights by default (f32 accumulation in the kernel); pass
    compute_dtype=jnp.float32 (or None) to keep full precision."""
    d_in, H = w1.shape
    d_out = w2.shape[1]
    # Lane-dense MXU K/N dims. (Minor possible tweak: round H up to 256 on
    # v6e/v7x whose MXU tile is 256 wide; 128 keeps padding minimal here.)
    d_in_p, H_p, d_out_p = (_round_up(d, 128) for d in (d_in, H, d_out))
    wdt = w1.dtype if compute_dtype is None else compute_dtype
    w1p = jnp.pad(w1.astype(wdt), ((0, d_in_p - d_in), (0, H_p - H)))
    w2p = jnp.pad(w2.astype(wdt), ((0, H_p - H), (0, d_out_p - d_out)))
    b1p = jnp.pad(b1.astype(jnp.float32), (0, H_p - H)).reshape(1, H_p)
    b2p = jnp.pad(b2.astype(jnp.float32), (0, d_out_p - d_out)).reshape(1, d_out_p)
    return (w1p, b1p, w2p, b2p), (d_in, H, d_out)


@functools.partial(jax.jit,
                   static_argnames=("d_out", "block_b", "single_buffer_weights"))
def _mlp_forward_padded(x, w1p, b1p, w2p, b2p, *, d_out, block_b,
                        single_buffer_weights):
    out_dtype = x.dtype                      # captured before any compute-dtype cast
    if x.dtype != w1p.dtype:
        x = x.astype(w1p.dtype)              # bf16 compute path by default

    B, d_in = x.shape
    d_in_p, H_p = w1p.shape
    d_out_p = w2p.shape[1]

    # Lane-pad only x's feature dim; the batch dim is handled by a ragged last
    # grid tile (no full HBM copy of the activations for batch padding).
    if d_in != d_in_p:
        x = jnp.pad(x, ((0, 0), (0, d_in_p - d_in)))

    in_itemsize = x.dtype.itemsize
    out_itemsize = jnp.dtype(out_dtype).itemsize
    sublane = 16 if x.dtype == jnp.bfloat16 else 8

    # Generation-aware VMEM budget: ~80% of physical; tiles sized to ~80% of that
    # (headroom for internal scratch / semaphores / double-buffered x & out).
    vmem_limit = min(int(_vmem_capacity_bytes() * 0.8), 112 * 1024 * 1024)
    budget = int(vmem_limit * 0.8)

    def footprint(bb_, ht_):
        wbytes = 2 * (d_in_p * ht_ + ht_ * d_out_p) * in_itemsize  # W1+W2 tiles (<=2 bufs)
        bbytes = 2 * (ht_ + d_out_p) * 4                           # f32 biases
        iobytes = 2 * bb_ * (d_in_p * in_itemsize + d_out_p * out_itemsize)
        scratch = bb_ * (d_out_p + ht_) * 4                        # f32 acc + hidden tile
        return wbytes + bbytes + iobytes + scratch

    # Batch tile: fill the MXU M dim (default 512 rows), never over-pad tiny
    # batches, and keep >= 2 grid steps so both v7x TensorCores get work.
    bb = max(min(_round_up(block_b, sublane), _round_up(B, sublane)), sublane)
    if B > sublane:
        bb = min(bb, max(_round_up(_ceil_div(B, 2), sublane), sublane))

    # Hidden tile: keep W1/W2 fully resident when they fit, otherwise tile H
    # (must divide H_p so no garbage hidden columns enter the accumulator).
    ht_candidates = [t for t in range(H_p, 0, -128) if H_p % t == 0]
    ht = next((t for t in ht_candidates if footprint(bb, t) <= budget),
              ht_candidates[-1])
    while bb > sublane and footprint(bb, ht) > budget:
        bb = max(_round_up(bb // 2, sublane), sublane)
    n_ht = H_p // ht

    def spec(shape, index_map, constant):
        # Constant-index operands are never re-fetched: single-buffer them so
        # resident weights don't cost 2x VMEM.
        if single_buffer_weights and constant:
            return pl.BlockSpec(shape, index_map, pipeline_mode=pl.Buffered(1))
        return pl.BlockSpec(shape, index_map)

    grid = (pl.cdiv(B, bb), n_ht)
    out = pl.pallas_call(
        _mlp_kernel,
        out_shape=jax.ShapeDtypeStruct((B, d_out_p), out_dtype),
        grid_spec=pltpu.PrefetchScalarGridSpec(
            num_scalar_prefetch=0,
            grid=grid,
            in_specs=[
                pl.BlockSpec((bb, d_in_p), lambda i, j: (i, 0)),       # x tile
                spec((d_in_p, ht), lambda i, j: (0, j), n_ht == 1),    # W1
                spec((1, ht), lambda i, j: (0, j), n_ht == 1),         # b1 (f32)
                spec((ht, d_out_p), lambda i, j: (j, 0), n_ht == 1),   # W2
                spec((1, d_out_p), lambda i, j: (0, 0), True),         # b2 (f32)
            ],
            out_specs=pl.BlockSpec((bb, d_out_p), lambda i, j: (i, 0)),
            scratch_shapes=[pltpu.VMEM((bb, d_out_p), jnp.float32)],
        ),
        compiler_params=pltpu.CompilerParams(
            dimension_semantics=("parallel", "arbitrary"),
            vmem_limit_bytes=vmem_limit),
    )(x, w1p, b1p, w2p, b2p)

    # Strip lane padding only (no batch padding was added).
    return out[:, :d_out]


def mlp_forward(x, params, dims, *, block_b=512):
    """Fused MLP forward with pre-padded params from prepare_mlp_params."""
    d_out = dims[2]
    try:
        return _mlp_forward_padded(x, *params, d_out=d_out, block_b=block_b,
                                   single_buffer_weights=True)
    except Exception:
        # pl.Buffered(1) not supported on this jax/Mosaic version: fall back to
        # default double-buffered (but still resident) weight blocks.
        return _mlp_forward_padded(x, *params, d_out=d_out, block_b=block_b,
                                   single_buffer_weights=False)


def init_mlp_params(key, input_dim, output_dim, hidden_size=128,
                    dtype=jnp.float32):
    """Deterministic init mimicking nn.Linear's U(-1/sqrt(fan_in), 1/sqrt(fan_in))."""
    k1, k2, k3, k4 = jax.random.split(key, 4)
    bound1 = 1.0 / jnp.sqrt(input_dim)
    bound2 = 1.0 / jnp.sqrt(hidden_size)
    # Stored already transposed: (in, out) so the kernel uses x @ W.
    w1 = jax.random.uniform(k1, (input_dim, hidden_size), dtype,
                            minval=-bound1, maxval=bound1)
    b1 = jax.random.uniform(k2, (hidden_size,), dtype,
                            minval=-bound1, maxval=bound1)
    w2 = jax.random.uniform(k3, (hidden_size, output_dim), dtype,
                            minval=-bound2, maxval=bound2)
    b2 = jax.random.uniform(k4, (output_dim,), dtype,
                            minval=-bound2, maxval=bound2)
    return w1, b1, w2, b2


def mlp_reference(x, w1, b1, w2, b2):
    h = jnp.maximum(x @ w1 + b1, 0.0)
    return jnp.maximum(h @ w2 + b2, 0.0)


if __name__ == "__main__":
    key = jax.random.PRNGKey(0)
    k_x, k_p = jax.random.split(key)

    batch, input_dim, hidden_size, output_dim = 200, 32, 128, 16
    x = jax.random.normal(k_x, (batch, input_dim), dtype=jnp.float32)
    w1, b1, w2, b2 = init_mlp_params(k_p, input_dim, output_dim, hidden_size)
    ref = mlp_reference(x, w1, b1, w2, b2)

    # f32 compute path (tight tolerance; >=2-step ragged batch grid).
    p32, dims = prepare_mlp_params(w1, b1, w2, b2, compute_dtype=jnp.float32)
    out32 = jax.block_until_ready(mlp_forward(x, p32, dims))
    assert out32.shape == (batch, output_dim), out32.shape
    assert jnp.allclose(out32, ref, atol=1e-5, rtol=1e-5), "mismatch (f32)"

    # Multi-tile path with a small batch tile (exercises grid + ragged last tile).
    out_mt = jax.block_until_ready(mlp_forward(x, p32, dims, block_b=64))
    assert out_mt.shape == (batch, output_dim), out_mt.shape
    assert jnp.allclose(out_mt, ref, atol=1e-5, rtol=1e-5), "mismatch (multi tile)"

    # Default bf16 compute path (f32 accumulation) -- looser tolerance.
    pbf, dims_bf = prepare_mlp_params(w1, b1, w2, b2)  # bf16 default
    outbf = jax.block_until_ready(mlp_forward(x, pbf, dims_bf))
    assert outbf.shape == (batch, output_dim), outbf.shape
    assert jnp.allclose(outbf, ref, atol=5e-2, rtol=5e-2), "mismatch (bf16)"

    print("KERNEL_OK")
</pallas_src>

<mosaic_0001>
module attributes {stable_mosaic.version = 11 : i64} {
  func.func @_mlp_kernel(%arg0: i32, %arg1: i32, %arg2: memref<104x128xf32, #tpu.memory_space<vmem>>, %arg3: memref<128x128xf32, #tpu.memory_space<vmem>>, %arg4: memref<1x128xf32, #tpu.memory_space<vmem>>, %arg5: memref<128x128xf32, #tpu.memory_space<vmem>>, %arg6: memref<1x128xf32, #tpu.memory_space<vmem>>, %arg7: memref<104x128xf32, #tpu.memory_space<vmem>>, %arg8: memref<104x128xf32, #tpu.memory_space<vmem>>) attributes {dimension_semantics = [#tpu.dimension_semantics<parallel>, #tpu.dimension_semantics<arbitrary>], iteration_bounds = array<i64: 2, 1>, scalar_prefetch = 0 : i64, scratch_operands = 1 : i64, tpu.core_type = #tpu.core_type<tc>, window_params = [{transform_indices = @transform_0, window_bounds = array<i64: 104, 128>}, {pipeline_mode = #tpu.pipeline_mode<synchronous>, transform_indices = @transform_1, window_bounds = array<i64: 128, 128>}, {pipeline_mode = #tpu.pipeline_mode<synchronous>, transform_indices = @transform_2, window_bounds = array<i64: 1, 128>}, {pipeline_mode = #tpu.pipeline_mode<synchronous>, transform_indices = @transform_3, window_bounds = array<i64: 128, 128>}, {pipeline_mode = #tpu.pipeline_mode<synchronous>, transform_indices = @transform_4, window_bounds = array<i64: 1, 128>}, {transform_indices = @transform_5, window_bounds = array<i64: 104, 128>}]} {
    %c0_i32 = arith.constant 0 : i32
    %0 = arith.cmpi eq, %arg1, %c0_i32 : i32
    %1 = arith.extui %0 : i1 to i32
    %c0_i32_0 = arith.constant 0 : i32
    %2 = arith.cmpi ne, %1, %c0_i32_0 : i32
    scf.if %2 {
      %cst_16 = arith.constant 0.000000e+00 : f32
      %19 = vector.broadcast %cst_16 : f32 to vector<104x128xf32>
      %c0_17 = arith.constant 0 : index
      %c0_18 = arith.constant 0 : index
      %20 = vector.load %arg8[%c0_17, %c0_18] : memref<104x128xf32, #tpu.memory_space<vmem>>, vector<104x128xf32>
      tpu.vector_store %arg8[%c0_17, %c0_18], %19 {strides = array<i32>} : memref<104x128xf32, #tpu.memory_space<vmem>>, vector<104x128xf32>,
    } else {
    }
    %c0 = arith.constant 0 : index
    %c0_1 = arith.constant 0 : index
    %3 = vector.load %arg2[%c0, %c0_1] : memref<104x128xf32, #tpu.memory_space<vmem>>, vector<104x128xf32>
    %c0_2 = arith.constant 0 : index
    %c0_3 = arith.constant 0 : index
    %4 = vector.load %arg3[%c0_2, %c0_3] : memref<128x128xf32, #tpu.memory_space<vmem>>, vector<128x128xf32>
    %cst = arith.constant dense<0.000000e+00> : vector<104x128xf32>
    %5 = tpu.matmul %3, %4, %cst {dimension_numbers = #tpu.dot_dimension_numbers<[1], [0], [0], [1], [0, 0, 1, 1], [], []>} : vector<104x128xf32>, vector<128x128xf32>, vector<104x128xf32> -> vector<104x128xf32>
    %c0_4 = arith.constant 0 : index
    %c0_5 = arith.constant 0 : index
    %6 = vector.load %arg4[%c0_4, %c0_5] : memref<1x128xf32, #tpu.memory_space<vmem>>, vector<1x128xf32>
    %7 = vector.broadcast %6 : vector<1x128xf32> to vector<104x128xf32>
    %8 = arith.addf %5, %7 : vector<104x128xf32>
    %cst_6 = arith.constant 0.000000e+00 : f32
    %9 = vector.broadcast %cst_6 : f32 to vector<104x128xf32>
    %10 = arith.maximumf %8, %9 : vector<104x128xf32>
    %c0_7 = arith.constant 0 : index
    %c0_8 = arith.constant 0 : index
    %11 = vector.load %arg8[%c0_7, %c0_8] : memref<104x128xf32, #tpu.memory_space<vmem>>, vector<104x128xf32>
    %c0_9 = arith.constant 0 : index
    %c0_10 = arith.constant 0 : index
    %12 = vector.load %arg5[%c0_9, %c0_10] : memref<128x128xf32, #tpu.memory_space<vmem>>, vector<128x128xf32>
    %cst_11 = arith.constant dense<0.000000e+00> : vector<104x128xf32>
    %13 = tpu.matmul %10, %12, %cst_11 {dimension_numbers = #tpu.dot_dimension_numbers<[1], [0], [0], [1], [0, 0, 1, 1], [], []>} : vector<104x128xf32>, vector<128x128xf32>, vector<104x128xf32> -> vector<104x128xf32>
    %14 = arith.addf %11, %13 : vector<104x128xf32>
    %c0_12 = arith.constant 0 : index
    %c0_13 = arith.constant 0 : index
    %15 = vector.load %arg8[%c0_12, %c0_13] : memref<104x128xf32, #tpu.memory_space<vmem>>, vector<104x128xf32>
    tpu.vector_store %arg8[%c0_12, %c0_13], %14 {strides = array<i32>} : memref<104x128xf32, #tpu.memory_space<vmem>>, vector<104x128xf32>,
    %c0_i32_14 = arith.constant 0 : i32
    %16 = arith.cmpi eq, %arg1, %c0_i32_14 : i32
    %17 = arith.extui %16 : i1 to i32
    %c0_i32_15 = arith.constant 0 : i32
    %18 = arith.cmpi ne, %17, %c0_i32_15 : i32
    scf.if %18 {
      %c0_16 = arith.constant 0 : index
      %c0_17 = arith.constant 0 : index
      %19 = vector.load %arg8[%c0_16, %c0_17] : memref<104x128xf32, #tpu.memory_space<vmem>>, vector<104x128xf32>
      %c0_18 = arith.constant 0 : index
      %c0_19 = arith.constant 0 : index
      %20 = vector.load %arg6[%c0_18, %c0_19] : memref<1x128xf32, #tpu.memory_space<vmem>>, vector<1x128xf32>
      %21 = vector.broadcast %20 : vector<1x128xf32> to vector<104x128xf32>
      %22 = arith.addf %19, %21 : vector<104x128xf32>
      %cst_20 = arith.constant 0.000000e+00 : f32
      %23 = vector.broadcast %cst_20 : f32 to vector<104x128xf32>
      %24 = arith.maximumf %22, %23 : vector<104x128xf32>
      %c0_21 = arith.constant 0 : index
      %c0_22 = arith.constant 0 : index
      %25 = vector.load %arg7[%c0_21, %c0_22] : memref<104x128xf32, #tpu.memory_space<vmem>>, vector<104x128xf32>
      tpu.vector_store %arg7[%c0_21, %c0_22], %24 {strides = array<i32>} : memref<104x128xf32, #tpu.memory_space<vmem>>, vector<104x128xf32>,
    } else {
    }
    return
  }
  func.func @transform_0(%arg0: i32, %arg1: i32) -> (i32, i32) {
    %c0_i32 = arith.constant 0 : i32
    %c0_i32_0 = arith.constant 0 : i32
    return %arg0, %c0_i32 : i32, i32
  }
  func.func @transform_1(%arg0: i32, %arg1: i32) -> (i32, i32) {
    %c0_i32 = arith.constant 0 : i32
    %c0_i32_0 = arith.constant 0 : i32
    return %c0_i32, %arg1 : i32, i32
  }
  func.func @transform_2(%arg0: i32, %arg1: i32) -> (i32, i32) {
    %c0_i32 = arith.constant 0 : i32
    %c0_i32_0 = arith.constant 0 : i32
    return %c0_i32, %arg1 : i32, i32
  }
  func.func @transform_3(%arg0: i32, %arg1: i32) -> (i32, i32) {
    %c0_i32 = arith.constant 0 : i32
    %c0_i32_0 = arith.constant 0 : i32
    return %arg1, %c0_i32 : i32, i32
  }
  func.func @transform_4(%arg0: i32, %arg1: i32) -> (i32, i32) {
    %c0_i32 = arith.constant 0 : i32
    %c0_i32_0 = arith.constant 0 : i32
    %c0_i32_1 = arith.constant 0 : i32
    return %c0_i32, %c0_i32_0 : i32, i32
  }
  func.func @transform_5(%arg0: i32, %arg1: i32) -> (i32, i32) {
    %c0_i32 = arith.constant 0 : i32
    %c0_i32_0 = arith.constant 0 : i32
    return %arg0, %c0_i32 : i32, i32
  }
}

module attributes {stable_mosaic.version = 11 : i64} {
  func.func @_mlp_kernel(%arg0: i32, %arg1: i32, %arg2: memref<104x128xf32, #tpu.memory_space<vmem>>, %arg3: memref<128x128xf32, #tpu.memory_space<vmem>>, %arg4: memref<1x128xf32, #tpu.memory_space<vmem>>, %arg5: memref<128x128xf32, #tpu.memory_space<vmem>>, %arg6: memref<1x128xf32, #tpu.memory_space<vmem>>, %arg7: memref<104x128xf32, #tpu.memory_space<vmem>>, %arg8: memref<104x128xf32, #tpu.memory_space<vmem>>) attributes {dimension_semantics = [#tpu.dimension_semantics<parallel>, #tpu.dimension_semantics<arbitrary>], iteration_bounds = array<i64: 2, 1>, scalar_prefetch = 0 : i64, scratch_operands = 1 : i64, tpu.core_type = #tpu.core_type<tc>, window_params = [{transform_indices = @transform_0, window_bounds = array<i64: 104, 128>}, {transform_indices = @transform_1, window_bounds = array<i64: 128, 128>}, {transform_indices = @transform_2, window_bounds = array<i64: 1, 128>}, {transform_indices = @transform_3, window_bounds = array<i64: 128, 128>}, {pipeline_mode = #tpu.pipeline_mode<synchronous>, transform_indices = @transform_4, window_bounds = array<i64: 1, 128>}, {transform_indices = @transform_5, window_bounds = array<i64: 104, 128>}]} {
    %c0_i32 = arith.constant 0 : i32
    %0 = arith.cmpi eq, %arg1, %c0_i32 : i32
    %1 = arith.extui %0 : i1 to i32
    %c0_i32_0 = arith.constant 0 : i32
    %2 = arith.cmpi ne, %1, %c0_i32_0 : i32
    scf.if %2 {
      %cst_16 = arith.constant 0.000000e+00 : f32
      %19 = vector.broadcast %cst_16 : f32 to vector<104x128xf32>
      %c0_17 = arith.constant 0 : index
      %c0_18 = arith.constant 0 : index
      %20 = vector.load %arg8[%c0_17, %c0_18] : memref<104x128xf32, #tpu.memory_space<vmem>>, vector<104x128xf32>
      tpu.vector_store %arg8[%c0_17, %c0_18], %19 {strides = array<i32>} : memref<104x128xf32, #tpu.memory_space<vmem>>, vector<104x128xf32>,
    } else {
    }
    %c0 = arith.constant 0 : index
    %c0_1 = arith.constant 0 : index
    %3 = vector.load %arg2[%c0, %c0_1] : memref<104x128xf32, #tpu.memory_space<vmem>>, vector<104x128xf32>
    %c0_2 = arith.constant 0 : index
    %c0_3 = arith.constant 0 : index
    %4 = vector.load %arg3[%c0_2, %c0_3] : memref<128x128xf32, #tpu.memory_space<vmem>>, vector<128x128xf32>
    %cst = arith.constant dense<0.000000e+00> : vector<104x128xf32>
    %5 = tpu.matmul %3, %4, %cst {dimension_numbers = #tpu.dot_dimension_numbers<[1], [0], [0], [1], [0, 0, 1, 1], [], []>} : vector<104x128xf32>, vector<128x128xf32>, vector<104x128xf32> -> vector<104x128xf32>
    %c0_4 = arith.constant 0 : index
    %c0_5 = arith.constant 0 : index
    %6 = vector.load %arg4[%c0_4, %c0_5] : memref<1x128xf32, #tpu.memory_space<vmem>>, vector<1x128xf32>
    %7 = vector.broadcast %6 : vector<1x128xf32> to vector<104x128xf32>
    %8 = arith.addf %5, %7 : vector<104x128xf32>
    %cst_6 = arith.constant 0.000000e+00 : f32
    %9 = vector.broadcast %cst_6 : f32 to vector<104x128xf32>
    %10 = arith.maximumf %8, %9 : vector<104x128xf32>
    %c0_7 = arith.constant 0 : index
    %c0_8 = arith.constant 0 : index
    %11 = vector.load %arg8[%c0_7, %c0_8] : memref<104x128xf32, #tpu.memory_space<vmem>>, vector<104x128xf32>
    %c0_9 = arith.constant 0 : index
    %c0_10 = arith.constant 0 : index
    %12 = vector.load %arg5[%c0_9, %c0_10] : memref<128x128xf32, #tpu.memory_space<vmem>>, vector<128x128xf32>
    %cst_11 = arith.constant dense<0.000000e+00> : vector<104x128xf32>
    %13 = tpu.matmul %10, %12, %cst_11 {dimension_numbers = #tpu.dot_dimension_numbers<[1], [0], [0], [1], [0, 0, 1, 1], [], []>} : vector<104x128xf32>, vector<128x128xf32>, vector<104x128xf32> -> vector<104x128xf32>
    %14 = arith.addf %11, %13 : vector<104x128xf32>
    %c0_12 = arith.constant 0 : index
    %c0_13 = arith.constant 0 : index
    %15 = vector.load %arg8[%c0_12, %c0_13] : memref<104x128xf32, #tpu.memory_space<vmem>>, vector<104x128xf32>
    tpu.vector_store %arg8[%c0_12, %c0_13], %14 {strides = array<i32>} : memref<104x128xf32, #tpu.memory_space<vmem>>, vector<104x128xf32>,
    %c0_i32_14 = arith.constant 0 : i32
    %16 = arith.cmpi eq, %arg1, %c0_i32_14 : i32
    %17 = arith.extui %16 : i1 to i32
    %c0_i32_15 = arith.constant 0 : i32
    %18 = arith.cmpi ne, %17, %c0_i32_15 : i32
    scf.if %18 {
      %c0_16 = arith.constant 0 : index
      %c0_17 = arith.constant 0 : index
      %19 = vector.load %arg8[%c0_16, %c0_17] : memref<104x128xf32, #tpu.memory_space<vmem>>, vector<104x128xf32>
      %c0_18 = arith.constant 0 : index
      %c0_19 = arith.constant 0 : index
      %20 = vector.load %arg6[%c0_18, %c0_19] : memref<1x128xf32, #tpu.memory_space<vmem>>, vector<1x128xf32>
      %21 = vector.broadcast %20 : vector<1x128xf32> to vector<104x128xf32>
      %22 = arith.addf %19, %21 : vector<104x128xf32>
      %cst_20 = arith.constant 0.000000e+00 : f32
      %23 = vector.broadcast %cst_20 : f32 to vector<104x128xf32>
      %24 = arith.maximumf %22, %23 : vector<104x128xf32>
      %c0_21 = arith.constant 0 : index
      %c0_22 = arith.constant 0 : index
      %25 = vector.load %arg7[%c0_21, %c0_22] : memref<104x128xf32, #tpu.memory_space<vmem>>, vector<104x128xf32>
      tpu.vector_store %arg7[%c0_21, %c0_22], %24 {strides = array<i32>} : memref<104x128xf32, #tpu.memory_space<vmem>>, vector<104x128xf32>,
    } else {
    }
    return
  }
  func.func @transform_0(%arg0: i32, %arg1: i32) -> (i32, i32) {
    %c0_i32 = arith.constant 0 : i32
    %c0_i32_0 = arith.constant 0 : i32
    return %arg0, %c0_i32 : i32, i32
  }
  func.func @transform_1(%arg0: i32, %arg1: i32) -> (i32, i32) {
    %c0_i32 = arith.constant 0 : i32
    %c0_i32_0 = arith.constant 0 : i32
    return %c0_i32, %arg1 : i32, i32
  }
  func.func @transform_2(%arg0: i32, %arg1: i32) -> (i32, i32) {
    %c0_i32 = arith.constant 0 : i32
    %c0_i32_0 = arith.constant 0 : i32
    return %c0_i32, %arg1 : i32, i32
  }
  func.func @transform_3(%arg0: i32, %arg1: i32) -> (i32, i32) {
    %c0_i32 = arith.constant 0 : i32
    %c0_i32_0 = arith.constant 0 : i32
    return %arg1, %c0_i32 : i32, i32
  }
  func.func @transform_4(%arg0: i32, %arg1: i32) -> (i32, i32) {
    %c0_i32 = arith.constant 0 : i32
    %c0_i32_0 = arith.constant 0 : i32
    %c0_i32_1 = arith.constant 0 : i32
    return %c0_i32, %c0_i32_0 : i32, i32
  }
  func.func @transform_5(%arg0: i32, %arg1: i32) -> (i32, i32) {
    %c0_i32 = arith.constant 0 : i32
    %c0_i32_0 = arith.constant 0 : i32
    return %arg0, %c0_i32 : i32, i32
  }
}

</mosaic_0001>

<llo_original>
// kernel: _mlp_forward_padded.1
$region0: #{_mlp_forward_padded.1}
  #allocation0 [shape = 'u32[]', space=smem, size = 0x4, offset = 0x4, fixed_abs, tag = 'smem constant byte address 0x4 - core index']
  #allocation1 [shape = 'u32[144,128]{1,0:T(1,128)}', space=vmem, size = 0x12000, scoped, tag = 'internal scratch']
  #allocation2 [shape = 'f32[104,128]{1,0:T(8,128)}', space=vmem, size = 0xd000, scoped, tag = 'scratch operand']
  %s0 = inlined_call_operand.vmem [shape: f32[200,128], index: 0, kind: input, shape index: {}]
  %s1 = inlined_call_operand.vmem [shape: f32[128,128], index: 1, kind: input, shape index: {}]
  %s2 = inlined_call_operand.vmem [shape: f32[1,128], index: 2, kind: input, shape index: {}]
  %s3 = inlined_call_operand.vmem [shape: f32[128,128], index: 3, kind: input, shape index: {}]
  %s4 = inlined_call_operand.vmem [shape: f32[1,128], index: 4, kind: input, shape index: {}]
  %s5 = inlined_call_operand.vmem [shape: f32[200,128], index: 5, kind: output, shape index: {}]
  %s6 = sld [smem:[#allocation0]]
  $region109: #{_mlp_forward_padded.1} parent=0
    _
  %s8 = ssub.s32 1, %s6
  %s9 = scalar_select 0, %s8, %s6
  $region1: #{_mlp_forward_padded.1} parent=0
    #allocation3 [shape = 'u8[106496]{0}', space=vmem, size = 0x1a000, scoped, tag = 'output window, operand 0']
    loop: start=0, step=1, limit=4
    $region2: #{_mlp_forward_padded.1} parent=1 // loop_pre_header
      _
    $region3: #{_mlp_forward_padded.1} parent=1 // loop_header
      %s11 = sphi 0, %s15
      %p12 = scmp.ge.s32.totalorder %s11, 4
      %s18 = sphi 0, %s30
      %s19 = sphi 0, %s26
      %s20 = sphi 0, %s18
      %s21 = sphi 0, %s19
      %s22 = sphi 0, %s20
      %s23 = sphi 0, %s21
      %s33 = sphi 0, %s35
      %s36 = sphi 0, %s33
      %s37 = sphi 0, %s36
      %s53 = sphi 0, %s37
      %s59 = sphi 0, %s61
      %s62 = sphi 0, %s59
      %s63 = sphi 0, %s62
      %s79 = sphi 0, %s63
      %s85 = sphi 0, %s87
      %s88 = sphi 0, %s85
      %s89 = sphi 0, %s88
      %s105 = sphi 0, %s89
      %s111 = sphi 0, %s113
      %s114 = sphi 0, %s111
      %s115 = sphi 0, %s114
      %s131 = sphi 0, %s115
      %s135 = sphi 0, %s135
      %s137 = sphi 0, %s135
      %s138 = sphi 0, %s137
      %s152 = sphi 0, %s138
      %s158 = sphi 0, %s160
      %s161 = sphi 0, %s158
      %s162 = sphi 0, %s161
      %s178 = sphi 0, %s162
    $region4: #{_mlp_forward_padded.1} parent=1 // loop_header_branch
      %14 = sbr.rel (%p12) target = $region8
    $region5: #{_mlp_forward_padded.1} parent=1 // loop_body
      %s16 = ssub.s32 %s11, 1
      %s17 = ssub.s32 %s11, 2
      %s24 = sadd.s32 1, %s19
      %p25 = scmp.ge.s32.totalorder %s24, 1
      %s26 = scalar_select %p25, 0, %s24
      %s27 = sadd.s32 1, %s18
      %s28 = scalar_select %p25, %s27, %s18
      %p29 = scmp.ge.s32.totalorder %s28, 2
      %s30 = scalar_select %p29, 0, %s28
      %s31 = ssub.s32 %s18, %s30
      %p32 = scmp.eq.s32.totalorder %s31, 0
      %s34 = sadd.s32 %s33, 1
      %s35 = scalar_select %p32, %s33, %s34
      %p38 = pneg %p32
      %p39 = scmp.eq.s32.totalorder %s11, 1
      %p40 = por %p38, %p39
      %p41 = scmp.ne.s32.totalorder %s33, %s36
      %p42 = scmp.eq.s32.totalorder %s11, 0
      %p43 = por %p41, %p42
      %p44 = scmp.ne.s32.totalorder %s33, %s36
      %p45 = scmp.eq.s32.totalorder %s16, 1
      %p46 = por %p44, %p45
      %p47 = scmp.ne.s32.totalorder %s36, %s37
      %p48 = scmp.eq.s32.totalorder %s16, 0
      %p49 = por %p47, %p48
      %p50 = scmp.ne.s32.totalorder %s36, %s37
      %p51 = scmp.eq.s32.totalorder %s17, 1
      %p52 = por %p50, %p51
      %p54 = scmp.ne.s32.totalorder %s37, %s53
      %p55 = scmp.eq.s32.totalorder %s17, 0
      %p56 = por %p54, %p55
      %s57 = ssub.s32 %s19, %s26
      %p58 = scmp.eq.s32.totalorder %s57, 0
      %s60 = sadd.s32 %s59, 1
      %s61 = scalar_select %p58, %s59, %s60
      %p64 = pneg %p58
      %p65 = scmp.eq.s32.totalorder %s11, 1
      %p66 = por %p64, %p65
      %p67 = scmp.ne.s32.totalorder %s59, %s62
      %p68 = scmp.eq.s32.totalorder %s11, 0
      %p69 = por %p67, %p68
      %p70 = scmp.ne.s32.totalorder %s59, %s62
      %p71 = scmp.eq.s32.totalorder %s16, 1
      %p72 = por %p70, %p71
      %p73 = scmp.ne.s32.totalorder %s62, %s63
      %p74 = scmp.eq.s32.totalorder %s16, 0
      %p75 = por %p73, %p74
      %p76 = scmp.ne.s32.totalorder %s62, %s63
      %p77 = scmp.eq.s32.totalorder %s17, 1
      %p78 = por %p76, %p77
      %p80 = scmp.ne.s32.totalorder %s63, %s79
      %p81 = scmp.eq.s32.totalorder %s17, 0
      %p82 = por %p80, %p81
      %s83 = ssub.s32 %s19, %s26
      %p84 = scmp.eq.s32.totalorder %s83, 0
      %s86 = sadd.s32 %s85, 1
      %s87 = scalar_select %p84, %s85, %s86
      %p90 = pneg %p84
      %p91 = scmp.eq.s32.totalorder %s11, 1
      %p92 = por %p90, %p91
      %p93 = scmp.ne.s32.totalorder %s85, %s88
      %p94 = scmp.eq.s32.totalorder %s11, 0
      %p95 = por %p93, %p94
      %p96 = scmp.ne.s32.totalorder %s85, %s88
      %p97 = scmp.eq.s32.totalorder %s16, 1
      %p98 = por %p96, %p97
      %p99 = scmp.ne.s32.totalorder %s88, %s89
      %p100 = scmp.eq.s32.totalorder %s16, 0
      %p101 = por %p99, %p100
      %p102 = scmp.ne.s32.totalorder %s88, %s89
      %p103 = scmp.eq.s32.totalorder %s17, 1
      %p104 = por %p102, %p103
      %p106 = scmp.ne.s32.totalorder %s89, %s105
      %p107 = scmp.eq.s32.totalorder %s17, 0
      %p108 = por %p106, %p107
      %s109 = ssub.s32 %s19, %s26
      %p110 = scmp.eq.s32.totalorder %s109, 0
      %s112 = sadd.s32 %s111, 1
      %s113 = scalar_select %p110, %s111, %s112
      %p116 = pneg %p110
      %p117 = scmp.eq.s32.totalorder %s11, 1
      %p118 = por %p116, %p117
      %p119 = scmp.ne.s32.totalorder %s111, %s114
      %p120 = scmp.eq.s32.totalorder %s11, 0
      %p121 = por %p119, %p120
      %p122 = scmp.ne.s32.totalorder %s111, %s114
      %p123 = scmp.eq.s32.totalorder %s16, 1
      %p124 = por %p122, %p123
      %p125 = scmp.ne.s32.totalorder %s114, %s115
      %p126 = scmp.eq.s32.totalorder %s16, 0
      %p127 = por %p125, %p126
      %p128 = scmp.ne.s32.totalorder %s114, %s115
      %p129 = scmp.eq.s32.totalorder %s17, 1
      %p130 = por %p128, %p129
      %p132 = scmp.ne.s32.totalorder %s115, %s131
      %p133 = scmp.eq.s32.totalorder %s17, 0
      %p134 = por %p132, %p133
      %s136 = sadd.s32 %s135, 1
      %p139 = scmp.eq.s32.totalorder %s11, 1
      %p140 = scmp.ne.s32.totalorder %s135, %s137
      %p141 = scmp.eq.s32.totalorder %s11, 0
      %p142 = por %p140, %p141
      %p143 = scmp.ne.s32.totalorder %s135, %s137
      %p144 = scmp.eq.s32.totalorder %s16, 1
      %p145 = por %p143, %p144
      %p146 = scmp.ne.s32.totalorder %s137, %s138
      %p147 = scmp.eq.s32.totalorder %s16, 0
      %p148 = por %p146, %p147
      %p149 = scmp.ne.s32.totalorder %s137, %s138
      %p150 = scmp.eq.s32.totalorder %s17, 1
      %p151 = por %p149, %p150
      %p153 = scmp.ne.s32.totalorder %s138, %s152
      %p154 = scmp.eq.s32.totalorder %s17, 0
      %p155 = por %p153, %p154
      %s156 = ssub.s32 %s18, %s30
      %p157 = scmp.eq.s32.totalorder %s156, 0
      %s159 = sadd.s32 %s158, 1
      %s160 = scalar_select %p157, %s158, %s159
      %p163 = pneg %p157
      %p164 = scmp.eq.s32.totalorder %s11, 1
      %p165 = por %p163, %p164
      %p166 = scmp.ne.s32.totalorder %s158, %s161
      %p167 = scmp.eq.s32.totalorder %s11, 0
      %p168 = por %p166, %p167
      %p169 = scmp.ne.s32.totalorder %s158, %s161
      %p170 = scmp.eq.s32.totalorder %s16, 1
      %p171 = por %p169, %p170
      %p172 = scmp.ne.s32.totalorder %s161, %s162
      %p173 = scmp.eq.s32.totalorder %s16, 0
      %p174 = por %p172, %p173
      %p175 = scmp.ne.s32.totalorder %s161, %s162
      %p176 = scmp.eq.s32.totalorder %s17, 1
      %p177 = por %p175, %p176
      %p179 = scmp.ne.s32.totalorder %s162, %s178
      %p180 = scmp.eq.s32.totalorder %s17, 0
      %p181 = por %p179, %p180
      %p182 = scmp.le.s32.totalorder 1, %s11
      %p183 = scmp.lt.s32.totalorder %s11, 3
      %p184 = pnand %p182, %p183
      %p185 = pneg %p184
      // Predicated region
      $region9: #{_mlp_forward_padded.1} parent=5 // pred_check
        _
      $region10: #{_mlp_forward_padded.1} parent=5 // pred_check_branch
        %187 = sbr.rel (%p184) target = $region12
      $region11: #{_mlp_forward_padded.1} parent=5 // pred_region
        %s188 = ssub.s32 %s11, 1
        // Predicated region
        $region13: #{_mlp_forward_padded.1} parent=11 // pred_check
          %p189 = pneg %p75
        $region14: #{_mlp_forward_padded.1} parent=11 // pred_check_branch
          %191 = sbr.rel (%p189) target = $region16
        $region15: #{_mlp_forward_padded.1} parent=11 // pred_region
          %p192 = scmp.lt.s32.totalorder %s21, 0
          %s193 = scalar_select %p192, %s21, 0
          %s194 = smul.addr %s193, 8
          %s195 = scalar_lea.vmem %s1, %s194
        $region16: #{_mlp_forward_padded.1} parent=11 // pred_fallthru
          _
        // Predicated region
        $region17: #{_mlp_forward_padded.1} parent=11 // pred_check
          %p196 = pneg %p101
        $region18: #{_mlp_forward_padded.1} parent=11 // pred_check_branch
          %198 = sbr.rel (%p196) target = $region20
        $region19: #{_mlp_forward_padded.1} parent=11 // pred_region
          %p199 = scmp.lt.s32.totalorder %s21, 0
          %s200 = scalar_select %p199, %s21, 0
          %s201 = scalar_lea.vmem %s2, %s200
        $region20: #{_mlp_forward_padded.1} parent=11 // pred_fallthru
          _
        // Predicated region
        $region21: #{_mlp_forward_padded.1} parent=11 // pred_check
          %p202 = pneg %p127
        $region22: #{_mlp_forward_padded.1} parent=11 // pred_check_branch
          %204 = sbr.rel (%p202) target = $region24
        $region23: #{_mlp_forward_padded.1} parent=11 // pred_region
          %s205 = smul.u32 16, %s21
          %p206 = scmp.lt.s32.totalorder %s205, 15
          %s207 = scalar_select %p206, %s205, 15
          %s208 = smul.addr %s207, 8
          %s209 = scalar_lea.vmem %s3, %s208
          %s210 = smul.u32 16, %s21
        $region24: #{_mlp_forward_padded.1} parent=11 // pred_fallthru
          _
        // Predicated region
        $region25: #{_mlp_forward_padded.1} parent=11 // pred_check
          %p211 = pneg %p148
        $region26: #{_mlp_forward_padded.1} parent=11 // pred_check_branch
          %213 = sbr.rel (%p211) target = $region28
        $region27: #{_mlp_forward_padded.1} parent=11 // pred_region
          _
        $region28: #{_mlp_forward_padded.1} parent=11 // pred_fallthru
          _
      $region12: #{_mlp_forward_padded.1} parent=5 // pred_fallthru
        _
      %p214 = scmp.lt.s32.totalorder %s11, 2
      // Predicated region
      $region29: #{_mlp_forward_padded.1} parent=5 // pred_check
        %p215 = pneg %p214
      $region30: #{_mlp_forward_padded.1} parent=5 // pred_check_branch
        %217 = sbr.rel (%p215) target = $region32
      $region31: #{_mlp_forward_padded.1} parent=5 // pred_region
        // Predicated region
        $region33: #{_mlp_forward_padded.1} parent=31 // pred_check
          %p218 = pneg %p43
        $region34: #{_mlp_forward_padded.1} parent=31 // pred_check_branch
          %220 = sbr.rel (%p218) target = $region36
        $region35: #{_mlp_forward_padded.1} parent=31 // pred_region
          %s221 = smul.u32 13, %s18
          %s222 = ssub.s32 25, %s221
          %p223 = scmp.lt.s32.totalorder %s222, 13
          %s224 = scalar_select %p223, %s222, 13
          %s225 = smul.u32 128, %s224
          %p226 = scmp.lt.s32.totalorder %s221, 24
          %s227 = scalar_select %p226, %s221, 24
          %s228 = smul.addr %s227, 8
          %s229 = scalar_lea.vmem %s0, %s228
          %s230 = smul.u32 13, %s18
          %s231 = ssub.s32 25, %s230
          %p232 = scmp.lt.s32.totalorder %s231, 13
          %s233 = scalar_select %p232, %s231, 13
          %s234 = smul.u32 128, %s233
        $region36: #{_mlp_forward_padded.1} parent=31 // pred_fallthru
          _
      $region32: #{_mlp_forward_padded.1} parent=5 // pred_fallthru
        _
      %p235 = scmp.le.s32.totalorder 1, %s11
      %p236 = scmp.lt.s32.totalorder %s11, 3
      %p237 = pnand %p235, %p236
      %p238 = pneg %p237
      // Predicated region
      $region37: #{_mlp_forward_padded.1} parent=5 // pred_check
        _
      $region38: #{_mlp_forward_padded.1} parent=5 // pred_check_branch
        %240 = sbr.rel (%p237) target = $region40
      $region39: #{_mlp_forward_padded.1} parent=5 // pred_region
        %s241 = ssub.s32 %s11, 1
        %s242 = smul.u32 13, %s20
        %s243 = ssub.s32 25, %s242
        %p244 = scmp.lt.s32.totalorder %s243, 13
        %s245 = scalar_select %p244, %s243, 13
        %s246 = smul.u32 128, %s245
        %p247 = scmp.lt.s32.totalorder %s242, 24
        %s248 = scalar_select %p247, %s242, 24
        %s249 = smul.addr %s248, 8
        %s250 = scalar_lea.vmem %s0, %s249
        %p251 = pneg %p49
        %p252 = pneg %p46
        %p253 = scmp.lt.s32.totalorder %s21, 0
        %s254 = scalar_select %p253, %s21, 0
        %s255 = smul.addr %s254, 8
        %s256 = scalar_lea.vmem %s1, %s255
        %p257 = pneg %p75
        %p258 = pneg %p72
        %p259 = scmp.lt.s32.totalorder %s21, 0
        %s260 = scalar_select %p259, %s21, 0
        %s261 = scalar_lea.vmem %s2, %s260
        %p262 = pneg %p101
        %p263 = pneg %p98
        %s264 = smul.u32 16, %s21
        %p265 = scmp.lt.s32.totalorder %s264, 15
        %s266 = scalar_select %p265, %s264, 15
        %s267 = smul.addr %s266, 8
        %s268 = scalar_lea.vmem %s3, %s267
        %p269 = pneg %p127
        %p270 = pneg %p124
        %p271 = pneg %p148
        %p272 = pneg %p145
        %p273 = pneg %p174
        %p274 = pneg %p171
        %s275 = sand.u32 %s161, 1
        %s276 = sand.u32 %s161, 1
        %s277 = smul.addr %s276, 104
        %s278 = scalar_lea.vmem [#allocation3], %s277
        %s279 = smul.u32 13, %s20
        %s280 = ssub.s32 25, %s279
        %p281 = scmp.lt.s32.totalorder %s280, 13
        %s282 = scalar_select %p281, %s280, 13
        %s283 = smul.u32 128, %s282
        %p284 = scmp.lt.s32.totalorder %s279, 24
        %s285 = scalar_select %p284, %s279, 24
        %s286 = smul.addr %s285, 8
        %s287 = scalar_lea.vmem %s0, %s286
        %s288 = smul.u32 13, %s20
        %s289 = ssub.s32 25, %s288
        %p290 = scmp.lt.s32.totalorder %s289, 13
        %s291 = scalar_select %p290, %s289, 13
        %s292 = smul.u32 128, %s291
        %p293 = scmp.lt.s32.totalorder %s21, 0
        %s294 = scalar_select %p293, %s21, 0
        %s295 = smul.addr %s294, 8
        %s296 = scalar_lea.vmem %s1, %s295
        %p297 = scmp.lt.s32.totalorder %s21, 0
        %s298 = scalar_select %p297, %s21, 0
        %s299 = scalar_lea.vmem %s2, %s298
        %s300 = smul.u32 16, %s21
        %p301 = scmp.lt.s32.totalorder %s300, 15
        %s302 = scalar_select %p301, %s300, 15
        %s303 = smul.addr %s302, 8
        %s304 = scalar_lea.vmem %s3, %s303
        %s305 = smul.u32 16, %s21
        %s306 = smul.u32 13, %s20
        %s307 = ssub.s32 25, %s306
        %p308 = scmp.lt.s32.totalorder %s307, 13
        %s309 = scalar_select %p308, %s307, 13
        %s310 = smul.u32 128, %s309
        %p311 = scmp.eq.s32.totalorder %s21, 0
        // Predicated region
        $region41: #{_mlp_forward_padded.1} parent=39 // pred_check
          %p312 = pneg %p311
        $region42: #{_mlp_forward_padded.1} parent=39 // pred_check_branch
          %314 = sbr.rel (%p312) target = $region44
        $region43: #{_mlp_forward_padded.1} parent=39 // pred_region
          %315 = vst [vmem:[#allocation2] sm:$0xff] 0.0
          %316 = vst [vmem:[#allocation2 + $0x8] sm:$0xff] 0.0
          %317 = vst [vmem:[#allocation2 + $0x10] sm:$0xff] 0.0
          %318 = vst [vmem:[#allocation2 + $0x18] sm:$0xff] 0.0
          %319 = vst [vmem:[#allocation2 + $0x20] sm:$0xff] 0.0
          %320 = vst [vmem:[#allocation2 + $0x28] sm:$0xff] 0.0
          %321 = vst [vmem:[#allocation2 + $0x30] sm:$0xff] 0.0
          %322 = vst [vmem:[#allocation2 + $0x38] sm:$0xff] 0.0
          %323 = vst [vmem:[#allocation2 + $0x40] sm:$0xff] 0.0
          %324 = vst [vmem:[#allocation2 + $0x48] sm:$0xff] 0.0
          %325 = vst [vmem:[#allocation2 + $0x50] sm:$0xff] 0.0
          %326 = vst [vmem:[#allocation2 + $0x58] sm:$0xff] 0.0
          %327 = vst [vmem:[#allocation2 + $0x60] sm:$0xff] 0.0
        $region44: #{_mlp_forward_padded.1} parent=39 // pred_fallthru
          _
        %v328 = vld [vmem:[%s287] sm:$0xff]
        %v329 = vld [vmem:[%s287 + $0x8] sm:$0xff]
        %v330 = vld [vmem:[%s287 + $0x10] sm:$0xff]
        %v331 = vld [vmem:[%s287 + $0x18] sm:$0xff]
        %v332 = vld [vmem:[%s287 + $0x20] sm:$0xff]
        %v333 = vld [vmem:[%s287 + $0x28] sm:$0xff]
        %v334 = vld [vmem:[%s287 + $0x30] sm:$0xff]
        %v335 = vld [vmem:[%s287 + $0x38] sm:$0xff]
        %v336 = vld [vmem:[%s287 + $0x40] sm:$0xff]
        %v337 = vld [vmem:[%s287 + $0x48] sm:$0xff]
        %v338 = vld [vmem:[%s287 + $0x50] sm:$0xff]
        %v339 = vld [vmem:[%s287 + $0x58] sm:$0xff]
        %v340 = vld [vmem:[%s287 + $0x60] sm:$0xff]
        %v341 = vld [vmem:[%s296] sm:$0xff]
        %v342 = vld [vmem:[%s296 + $0x8] sm:$0xff]
        %v343 = vld [vmem:[%s296 + $0x10] sm:$0xff]
        %v344 = vld [vmem:[%s296 + $0x18] sm:$0xff]
        %v345 = vld [vmem:[%s296 + $0x20] sm:$0xff]
        %v346 = vld [vmem:[%s296 + $0x28] sm:$0xff]
        %v347 = vld [vmem:[%s296 + $0x30] sm:$0xff]
        %v348 = vld [vmem:[%s296 + $0x38] sm:$0xff]
        %v349 = vld [vmem:[%s296 + $0x40] sm:$0xff]
        %v350 = vld [vmem:[%s296 + $0x48] sm:$0xff]
        %v351 = vld [vmem:[%s296 + $0x50] sm:$0xff]
        %v352 = vld [vmem:[%s296 + $0x58] sm:$0xff]
        %v353 = vld [vmem:[%s296 + $0x60] sm:$0xff]
        %v354 = vld [vmem:[%s296 + $0x68] sm:$0xff]
        %v355 = vld [vmem:[%s296 + $0x70] sm:$0xff]
        %v356 = vld [vmem:[%s296 + $0x78] sm:$0xff]
        %v357 = vld [vmem:[%s299] sm:$0x1]
        %v359 = vlaneseq
        %v360 = vshrl.u32 %v359, 7
        %v361 = vsub.s32 0, %v360
        %v362 = vrot.slane %v357, %v361
        %364 = vmatprep.subr.mxu0 0.0
        %365 = vmatpush1.msra.mxu0 %v356
        %366 = vmatprep.subr.mxu0 0.0
        %367 = vmatpush1.msra.mxu0 %v355
        %368 = vmatprep.subr.mxu0 0.0
        %369 = vmatpush1.msra.mxu0 %v354
        %370 = vmatprep.subr.mxu0 0.0
        %371 = vmatpush1.msra.mxu0 %v353
        %372 = vmatprep.subr.mxu0 0.0
        %373 = vmatpush1.msra.mxu0 %v352
        %374 = vmatprep.subr.mxu0 0.0
        %375 = vmatpush1.msra.mxu0 %v351
        %376 = vmatprep.subr.mxu0 0.0
        %377 = vmatpush1.msra.mxu0 %v350
        %378 = vmatprep.subr.mxu0 0.0
        %379 = vmatpush1.msra.mxu0 %v349
        %380 = vmatprep.subr.mxu0 0.0
        %381 = vmatpush1.msra.mxu0 %v348
        %382 = vmatprep.subr.mxu0 0.0
        %383 = vmatpush1.msra.mxu0 %v347
        %384 = vmatprep.subr.mxu0 0.0
        %385 = vmatpush1.msra.mxu0 %v346
        %386 = vmatprep.subr.mxu0 0.0
        %387 = vmatpush1.msra.mxu0 %v345
        %388 = vmatprep.subr.mxu0 0.0
        %389 = vmatpush1.msra.mxu0 %v344
        %390 = vmatprep.subr.mxu0 0.0
        %391 = vmatpush1.msra.mxu0 %v343
        %392 = vmatprep.subr.mxu0 0.0
        %393 = vmatpush1.msra.mxu0 %v342
        %394 = vmatprep.subr.mxu0 0.0
        %395 = vmatpush1.msra.mxu0 %v341
        %396 = vmatprep.subr.mxu0 0.0
        %397 = vmatpush2.msra.mxu0 0.0
        %398 = vmatprep.subr.mxu0 0.0
        %399 = vmatpush2.msra.mxu0 0.0
        %400 = vmatprep.subr.mxu0 0.0
        %401 = vmatpush2.msra.mxu0 0.0
        %402 = vmatprep.subr.mxu0 0.0
        %403 = vmatpush2.msra.mxu0 0.0
        %404 = vmatprep.subr.mxu0 0.0
        %405 = vmatpush2.msra.mxu0 0.0
        %406 = vmatprep.subr.mxu0 0.0
        %407 = vmatpush2.msra.mxu0 0.0
        %408 = vmatprep.subr.mxu0 0.0
        %409 = vmatpush2.msra.mxu0 0.0
        %410 = vmatprep.subr.mxu0 0.0
        %411 = vmatpush2.msra.mxu0 0.0
        %412 = vmatprep.subr.mxu0 0.0
        %413 = vmatpush2.msra.mxu0 0.0
        %414 = vmatprep.subr.mxu0 0.0
        %415 = vmatpush2.msra.mxu0 0.0
        %416 = vmatprep.subr.mxu0 0.0
        %417 = vmatpush2.msra.mxu0 0.0
        %418 = vmatprep.subr.mxu0 0.0
        %419 = vmatpush2.msra.mxu0 0.0
        %420 = vmatprep.subr.mxu0 0.0
        %421 = vmatpush2.msra.mxu0 0.0
        %422 = vmatprep.subr.mxu0 0.0
        %423 = vmatpush2.msra.mxu0 0.0
        %424 = vmatprep.subr.mxu0 0.0
        %425 = vmatpush2.msra.mxu0 0.0
        %426 = vmatprep.subr.mxu0 0.0
        %427 = vmatpush2.msra.mxu0 0.0
        %428 = vmatprep.mubr.f32.mxu0 0.0
        %429 = vmatmul.mubr.f32.gmra.mxu0 %v328
        %v430 = vpop.f32.mrf.mxu0
        %v431 = vadd.f32 %v362, %v430
        %v432 = vpop.f32.mrf.mxu0
        %433 = vmatprep.mubr.f32.mxu0 0.0
        %434 = vmatmul.mubr.f32.gmra.mxu0 %v329
        %v435 = vpop.f32.mrf.mxu0
        %v436 = vadd.f32 %v362, %v435
        %v437 = vpop.f32.mrf.mxu0
        %438 = vmatprep.mubr.f32.mxu0 0.0
        %439 = vmatmul.mubr.f32.gmra.mxu0 %v330
        %v440 = vpop.f32.mrf.mxu0
        %v441 = vadd.f32 %v362, %v440
        %v442 = vpop.f32.mrf.mxu0
        %443 = vmatprep.mubr.f32.mxu0 0.0
        %444 = vmatmul.mubr.f32.gmra.mxu0 %v331
        %v445 = vpop.f32.mrf.mxu0
        %v446 = vadd.f32 %v362, %v445
        %v447 = vpop.f32.mrf.mxu0
        %448 = vmatprep.mubr.f32.mxu0 0.0
        %449 = vmatmul.mubr.f32.gmra.mxu0 %v332
        %v450 = vpop.f32.mrf.mxu0
        %v451 = vadd.f32 %v362, %v450
        %v452 = vpop.f32.mrf.mxu0
        %453 = vmatprep.mubr.f32.mxu0 0.0
        %454 = vmatmul.mubr.f32.gmra.mxu0 %v333
        %v455 = vpop.f32.mrf.mxu0
        %v456 = vadd.f32 %v362, %v455
        %v457 = vpop.f32.mrf.mxu0
        %458 = vmatprep.mubr.f32.mxu0 0.0
        %459 = vmatmul.mubr.f32.gmra.mxu0 %v334
        %v460 = vpop.f32.mrf.mxu0
        %v461 = vadd.f32 %v362, %v460
        %v462 = vpop.f32.mrf.mxu0
        %463 = vmatprep.mubr.f32.mxu0 0.0
        %464 = vmatmul.mubr.f32.gmra.mxu0 %v335
        %v465 = vpop.f32.mrf.mxu0
        %v466 = vadd.f32 %v362, %v465
        %v467 = vpop.f32.mrf.mxu0
        %468 = vmatprep.mubr.f32.mxu0 0.0
        %469 = vmatmul.mubr.f32.gmra.mxu0 %v336
        %v470 = vpop.f32.mrf.mxu0
        %v471 = vadd.f32 %v362, %v470
        %v472 = vpop.f32.mrf.mxu0
        %473 = vmatprep.mubr.f32.mxu0 0.0
        %474 = vmatmul.mubr.f32.gmra.mxu0 %v337
        %v475 = vpop.f32.mrf.mxu0
        %v476 = vadd.f32 %v362, %v475
        %v477 = vpop.f32.mrf.mxu0
        %478 = vmatprep.mubr.f32.mxu0 0.0
        %479 = vmatmul.mubr.f32.gmra.mxu0 %v338
        %v480 = vpop.f32.mrf.mxu0
        %v481 = vadd.f32 %v362, %v480
        %v482 = vpop.f32.mrf.mxu0
        %483 = vmatprep.mubr.f32.mxu0 0.0
        %484 = vmatmul.mubr.f32.gmra.mxu0 %v339
        %v485 = vpop.f32.mrf.mxu0
        %v486 = vadd.f32 %v362, %v485
        %v487 = vpop.f32.mrf.mxu0
        %488 = vmatprep.mubr.f32.mxu0 0.0
        %489 = vmatmul.mubr.f32.gmra.mxu0 %v340
        %v490 = vpop.f32.mrf.mxu0
        %v491 = vadd.f32 %v362, %v490
        %v492 = vpop.f32.mrf.mxu0
        %493 = vdwg.mxu0
        %v494 = vmax.f32 %v431, 0.0
        %v495 = vmax.f32 %v436, 0.0
        %v496 = vmax.f32 %v441, 0.0
        %v497 = vmax.f32 %v446, 0.0
        %v498 = vmax.f32 %v451, 0.0
        %v499 = vmax.f32 %v456, 0.0
        %v500 = vmax.f32 %v461, 0.0
        %v501 = vmax.f32 %v466, 0.0
        %v502 = vmax.f32 %v471, 0.0
        %v503 = vmax.f32 %v476, 0.0
        %v504 = vmax.f32 %v481, 0.0
        %v505 = vmax.f32 %v486, 0.0
        %v506 = vmax.f32 %v491, 0.0
        %v507 = vld [vmem:[#allocation2] sm:$0xff]
        %v508 = vld [vmem:[#allocation2 + $0x8] sm:$0xff]
        %v509 = vld [vmem:[#allocation2 + $0x10] sm:$0xff]
        %v510 = vld [vmem:[#allocation2 + $0x18] sm:$0xff]
        %v511 = vld [vmem:[#allocation2 + $0x20] sm:$0xff]
        %v512 = vld [vmem:[#allocation2 + $0x28] sm:$0xff]
        %v513 = vld [vmem:[#allocation2 + $0x30] sm:$0xff]
        %v514 = vld [vmem:[#allocation2 + $0x38] sm:$0xff]
        %v515 = vld [vmem:[#allocation2 + $0x40] sm:$0xff]
        %v516 = vld [vmem:[#allocation2 + $0x48] sm:$0xff]
        %v517 = vld [vmem:[#allocation2 + $0x50] sm:$0xff]
        %v518 = vld [vmem:[#allocation2 + $0x58] sm:$0xff]
        %v519 = vld [vmem:[#allocation2 + $0x60] sm:$0xff]
        %v520 = vld [vmem:[%s304] sm:$0xff]
        %v521 = vld [vmem:[%s304 + $0x8] sm:$0xff]
        %v522 = vld [vmem:[%s304 + $0x10] sm:$0xff]
        %v523 = vld [vmem:[%s304 + $0x18] sm:$0xff]
        %v524 = vld [vmem:[%s304 + $0x20] sm:$0xff]
        %v525 = vld [vmem:[%s304 + $0x28] sm:$0xff]
        %v526 = vld [vmem:[%s304 + $0x30] sm:$0xff]
        %v527 = vld [vmem:[%s304 + $0x38] sm:$0xff]
        %v528 = vld [vmem:[%s304 + $0x40] sm:$0xff]
        %v529 = vld [vmem:[%s304 + $0x48] sm:$0xff]
        %v530 = vld [vmem:[%s304 + $0x50] sm:$0xff]
        %v531 = vld [vmem:[%s304 + $0x58] sm:$0xff]
        %v532 = vld [vmem:[%s304 + $0x60] sm:$0xff]
        %v533 = vld [vmem:[%s304 + $0x68] sm:$0xff]
        %v534 = vld [vmem:[%s304 + $0x70] sm:$0xff]
        %v535 = vld [vmem:[%s304 + $0x78] sm:$0xff]
        %536 = vmatprep.subr.mxu0 0.0
        %537 = vmatpush1.msra.mxu0 %v535
        %538 = vmatprep.subr.mxu0 0.0
        %539 = vmatpush1.msra.mxu0 %v534
        %540 = vmatprep.subr.mxu0 0.0
        %541 = vmatpush1.msra.mxu0 %v533
        %542 = vmatprep.subr.mxu0 0.0
        %543 = vmatpush1.msra.mxu0 %v532
        %544 = vmatprep.subr.mxu0 0.0
        %545 = vmatpush1.msra.mxu0 %v531
        %546 = vmatprep.subr.mxu0 0.0
        %547 = vmatpush1.msra.mxu0 %v530
        %548 = vmatprep.subr.mxu0 0.0
        %549 = vmatpush1.msra.mxu0 %v529
        %550 = vmatprep.subr.mxu0 0.0
        %551 = vmatpush1.msra.mxu0 %v528
        %552 = vmatprep.subr.mxu0 0.0
        %553 = vmatpush1.msra.mxu0 %v527
        %554 = vmatprep.subr.mxu0 0.0
        %555 = vmatpush1.msra.mxu0 %v526
        %556 = vmatprep.subr.mxu0 0.0
        %557 = vmatpush1.msra.mxu0 %v525
        %558 = vmatprep.subr.mxu0 0.0
        %559 = vmatpush1.msra.mxu0 %v524
        %560 = vmatprep.subr.mxu0 0.0
        %561 = vmatpush1.msra.mxu0 %v523
        %562 = vmatprep.subr.mxu0 0.0
        %563 = vmatpush1.msra.mxu0 %v522
        %564 = vmatprep.subr.mxu0 0.0
        %565 = vmatpush1.msra.mxu0 %v521
        %566 = vmatprep.subr.mxu0 0.0
        %567 = vmatpush1.msra.mxu0 %v520
        %568 = vmatprep.subr.mxu0 0.0
        %569 = vmatpush2.msra.mxu0 0.0
        %570 = vmatprep.subr.mxu0 0.0
        %571 = vmatpush2.msra.mxu0 0.0
        %572 = vmatprep.subr.mxu0 0.0
        %573 = vmatpush2.msra.mxu0 0.0
        %574 = vmatprep.subr.mxu0 0.0
        %575 = vmatpush2.msra.mxu0 0.0
        %576 = vmatprep.subr.mxu0 0.0
        %577 = vmatpush2.msra.mxu0 0.0
        %578 = vmatprep.subr.mxu0 0.0
        %579 = vmatpush2.msra.mxu0 0.0
        %580 = vmatprep.subr.mxu0 0.0
        %581 = vmatpush2.msra.mxu0 0.0
        %582 = vmatprep.subr.mxu0 0.0
        %583 = vmatpush2.msra.mxu0 0.0
        %584 = vmatprep.subr.mxu0 0.0
        %585 = vmatpush2.msra.mxu0 0.0
        %586 = vmatprep.subr.mxu0 0.0
        %587 = vmatpush2.msra.mxu0 0.0
        %588 = vmatprep.subr.mxu0 0.0
        %589 = vmatpush2.msra.mxu0 0.0
        %590 = vmatprep.subr.mxu0 0.0
        %591 = vmatpush2.msra.mxu0 0.0
        %592 = vmatprep.subr.mxu0 0.0
        %593 = vmatpush2.msra.mxu0 0.0
        %594 = vmatprep.subr.mxu0 0.0
        %595 = vmatpush2.msra.mxu0 0.0
        %596 = vmatprep.subr.mxu0 0.0
        %597 = vmatpush2.msra.mxu0 0.0
        %598 = vmatprep.subr.mxu0 0.0
        %599 = vmatpush2.msra.mxu0 0.0
        %600 = vmatprep.mubr.f32.mxu0 0.0
        %601 = vmatmul.mubr.f32.gmra.mxu0 %v494
        %v602 = vpop.f32.mrf.mxu0
        %v603 = vadd.f32 0.0, %v602
        %v604 = vpop.f32.mrf.mxu0
        %605 = vmatprep.mubr.f32.mxu0 0.0
        %606 = vmatmul.mubr.f32.gmra.mxu0 %v495
        %v607 = vpop.f32.mrf.mxu0
        %v608 = vadd.f32 0.0, %v607
        %v609 = vpop.f32.mrf.mxu0
        %610 = vmatprep.mubr.f32.mxu0 0.0
        %611 = vmatmul.mubr.f32.gmra.mxu0 %v496
        %v612 = vpop.f32.mrf.mxu0
        %v613 = vadd.f32 0.0, %v612
        %v614 = vpop.f32.mrf.mxu0
        %615 = vmatprep.mubr.f32.mxu0 0.0
        %616 = vmatmul.mubr.f32.gmra.mxu0 %v497
        %v617 = vpop.f32.mrf.mxu0
        %v618 = vadd.f32 0.0, %v617
        %v619 = vpop.f32.mrf.mxu0
        %620 = vmatprep.mubr.f32.mxu0 0.0
        %621 = vmatmul.mubr.f32.gmra.mxu0 %v498
        %v622 = vpop.f32.mrf.mxu0
        %v623 = vadd.f32 0.0, %v622
        %v624 = vpop.f32.mrf.mxu0
        %625 = vmatprep.mubr.f32.mxu0 0.0
        %626 = vmatmul.mubr.f32.gmra.mxu0 %v499
        %v627 = vpop.f32.mrf.mxu0
        %v628 = vadd.f32 0.0, %v627
        %v629 = vpop.f32.mrf.mxu0
        %630 = vmatprep.mubr.f32.mxu0 0.0
        %631 = vmatmul.mubr.f32.gmra.mxu0 %v500
        %v632 = vpop.f32.mrf.mxu0
        %v633 = vadd.f32 0.0, %v632
        %v634 = vpop.f32.mrf.mxu0
        %635 = vmatprep.mubr.f32.mxu0 0.0
        %636 = vmatmul.mubr.f32.gmra.mxu0 %v501
        %v637 = vpop.f32.mrf.mxu0
        %v638 = vadd.f32 0.0, %v637
        %v639 = vpop.f32.mrf.mxu0
        %640 = vmatprep.mubr.f32.mxu0 0.0
        %641 = vmatmul.mubr.f32.gmra.mxu0 %v502
        %v642 = vpop.f32.mrf.mxu0
        %v643 = vadd.f32 0.0, %v642
        %v644 = vpop.f32.mrf.mxu0
        %645 = vmatprep.mubr.f32.mxu0 0.0
        %646 = vmatmul.mubr.f32.gmra.mxu0 %v503
        %v647 = vpop.f32.mrf.mxu0
        %v648 = vadd.f32 0.0, %v647
        %v649 = vpop.f32.mrf.mxu0
        %650 = vmatprep.mubr.f32.mxu0 0.0
        %651 = vmatmul.mubr.f32.gmra.mxu0 %v504
        %v652 = vpop.f32.mrf.mxu0
        %v653 = vadd.f32 0.0, %v652
        %v654 = vpop.f32.mrf.mxu0
        %655 = vmatprep.mubr.f32.mxu0 0.0
        %656 = vmatmul.mubr.f32.gmra.mxu0 %v505
        %v657 = vpop.f32.mrf.mxu0
        %v658 = vadd.f32 0.0, %v657
        %v659 = vpop.f32.mrf.mxu0
        %660 = vmatprep.mubr.f32.mxu0 0.0
        %661 = vmatmul.mubr.f32.gmra.mxu0 %v506
        %v662 = vpop.f32.mrf.mxu0
        %v663 = vadd.f32 0.0, %v662
        %v664 = vpop.f32.mrf.mxu0
        %665 = vdwg.mxu0
        %v666 = vadd.f32 %v507, %v603
        %v667 = vadd.f32 %v508, %v608
        %v668 = vadd.f32 %v509, %v613
        %v669 = vadd.f32 %v510, %v618
        %v670 = vadd.f32 %v511, %v623
        %v671 = vadd.f32 %v512, %v628
        %v672 = vadd.f32 %v513, %v633
        %v673 = vadd.f32 %v514, %v638
        %v674 = vadd.f32 %v515, %v643
        %v675 = vadd.f32 %v516, %v648
        %v676 = vadd.f32 %v517, %v653
        %v677 = vadd.f32 %v518, %v658
        %v678 = vadd.f32 %v519, %v663
        %679 = vst [vmem:[#allocation2] sm:$0xff] %v666
        %680 = vst [vmem:[#allocation2 + $0x8] sm:$0xff] %v667
        %681 = vst [vmem:[#allocation2 + $0x10] sm:$0xff] %v668
        %682 = vst [vmem:[#allocation2 + $0x18] sm:$0xff] %v669
        %683 = vst [vmem:[#allocation2 + $0x20] sm:$0xff] %v670
        %684 = vst [vmem:[#allocation2 + $0x28] sm:$0xff] %v671
        %685 = vst [vmem:[#allocation2 + $0x30] sm:$0xff] %v672
        %686 = vst [vmem:[#allocation2 + $0x38] sm:$0xff] %v673
        %687 = vst [vmem:[#allocation2 + $0x40] sm:$0xff] %v674
        %688 = vst [vmem:[#allocation2 + $0x48] sm:$0xff] %v675
        %689 = vst [vmem:[#allocation2 + $0x50] sm:$0xff] %v676
        %690 = vst [vmem:[#allocation2 + $0x58] sm:$0xff] %v677
        %691 = vst [vmem:[#allocation2 + $0x60] sm:$0xff] %v678
        // Predicated region
        $region45: #{_mlp_forward_padded.1} parent=39 // pred_check
          %p692 = pneg %p311
        $region46: #{_mlp_forward_padded.1} parent=39 // pred_check_branch
          %694 = sbr.rel (%p692) target = $region48
        $region47: #{_mlp_forward_padded.1} parent=39 // pred_region
          %v695 = vld [vmem:[#allocation2] sm:$0xff]
          %v696 = vld [vmem:[#allocation2 + $0x8] sm:$0xff]
          %v697 = vld [vmem:[#allocation2 + $0x10] sm:$0xff]
          %v698 = vld [vmem:[#allocation2 + $0x18] sm:$0xff]
          %v699 = vld [vmem:[#allocation2 + $0x20] sm:$0xff]
          %v700 = vld [vmem:[#allocation2 + $0x28] sm:$0xff]
          %v701 = vld [vmem:[#allocation2 + $0x30] sm:$0xff]
          %v702 = vld [vmem:[#allocation2 + $0x38] sm:$0xff]
          %v703 = vld [vmem:[#allocation2 + $0x40] sm:$0xff]
          %v704 = vld [vmem:[#allocation2 + $0x48] sm:$0xff]
          %v705 = vld [vmem:[#allocation2 + $0x50] sm:$0xff]
          %v706 = vld [vmem:[#allocation2 + $0x58] sm:$0xff]
          %v707 = vld [vmem:[#allocation2 + $0x60] sm:$0xff]
          %v708 = vld [vmem:[%s4] sm:$0x1]
          %v710 = vlaneseq
          %v711 = vshrl.u32 %v710, 7
          %v712 = vsub.s32 0, %v711
          %v713 = vrot.slane %v708, %v712
          %v715 = vadd.f32 %v695, %v713
          %v716 = vadd.f32 %v696, %v713
          %v717 = vadd.f32 %v697, %v713
          %v718 = vadd.f32 %v698, %v713
          %v719 = vadd.f32 %v699, %v713
          %v720 = vadd.f32 %v700, %v713
          %v721 = vadd.f32 %v701, %v713
          %v722 = vadd.f32 %v702, %v713
          %v723 = vadd.f32 %v703, %v713
          %v724 = vadd.f32 %v704, %v713
          %v725 = vadd.f32 %v705, %v713
          %v726 = vadd.f32 %v706, %v713
          %v727 = vadd.f32 %v707, %v713
          %v728 = vmax.f32 %v715, 0.0
          %v729 = vmax.f32 %v716, 0.0
          %v730 = vmax.f32 %v717, 0.0
          %v731 = vmax.f32 %v718, 0.0
          %v732 = vmax.f32 %v719, 0.0
          %v733 = vmax.f32 %v720, 0.0
          %v734 = vmax.f32 %v721, 0.0
          %v735 = vmax.f32 %v722, 0.0
          %v736 = vmax.f32 %v723, 0.0
          %v737 = vmax.f32 %v724, 0.0
          %v738 = vmax.f32 %v725, 0.0
          %v739 = vmax.f32 %v726, 0.0
          %v740 = vmax.f32 %v727, 0.0
          %741 = vst [vmem:[%s278] sm:$0xff] %v728
          %742 = vst [vmem:[%s278 + $0x8] sm:$0xff] %v729
          %743 = vst [vmem:[%s278 + $0x10] sm:$0xff] %v730
          %744 = vst [vmem:[%s278 + $0x18] sm:$0xff] %v731
          %745 = vst [vmem:[%s278 + $0x20] sm:$0xff] %v732
          %746 = vst [vmem:[%s278 + $0x28] sm:$0xff] %v733
          %747 = vst [vmem:[%s278 + $0x30] sm:$0xff] %v734
          %748 = vst [vmem:[%s278 + $0x38] sm:$0xff] %v735
          %749 = vst [vmem:[%s278 + $0x40] sm:$0xff] %v736
          %750 = vst [vmem:[%s278 + $0x48] sm:$0xff] %v737
          %751 = vst [vmem:[%s278 + $0x50] sm:$0xff] %v738
          %752 = vst [vmem:[%s278 + $0x58] sm:$0xff] %v739
          %753 = vst [vmem:[%s278 + $0x60] sm:$0xff] %v740
        $region48: #{_mlp_forward_padded.1} parent=39 // pred_fallthru
          _
        %s754 = sand.u32 %s161, 1
        %s755 = sand.u32 %s161, 1
        %s756 = smul.addr %s755, 104
        %s757 = scalar_lea.vmem [#allocation3], %s756
        // Predicated region
        $region49: #{_mlp_forward_padded.1} parent=39 // pred_check
          %p758 = pneg %p171
        $region50: #{_mlp_forward_padded.1} parent=39 // pred_check_branch
          %760 = sbr.rel (%p758) target = $region52
        $region51: #{_mlp_forward_padded.1} parent=39 // pred_region
          %s761 = smul.u32 13, %s20
          %s762 = ssub.s32 25, %s761
          %p763 = scmp.lt.s32.totalorder %s762, 13
          %s764 = scalar_select %p763, %s762, 13
          %s765 = smul.u32 128, %s764
          %p766 = scmp.ne.s32.totalorder 0, %s765
          %s767 = smul.addr %s761, 8
          %s768 = scalar_lea.vmem %s5, %s767
          // Predicated region
          $region53: #{_mlp_forward_padded.1} parent=51 // pred_check
            %p769 = pneg %p766
          $region54: #{_mlp_forward_padded.1} parent=51 // pred_check_branch
            %771 = sbr.rel (%p769) target = $region56
          $region55: #{_mlp_forward_padded.1} parent=51 // pred_region
            // Predicated region
            $region57: #{_mlp_forward_padded.1} parent=55 // pred_check
              _
            $region58: #{_mlp_forward_padded.1} parent=55 // pred_check_branch
              %773 = sbr.rel (0) target = $region60
            $region59: #{_mlp_forward_padded.1} parent=55 // pred_region
              // Predicated region
              $region79: #{_mlp_forward_padded.1} parent=59 // pred_check
                _
              $region80: #{_mlp_forward_padded.1} parent=59 // pred_check_branch
                %848 = sbr.rel (0) target = $region82
              $region81: #{_mlp_forward_padded.1} parent=59 // pred_region
                %s849 = sdiv.u32.pop %s764, 13
                %s850 = srem.u32.pop %s764, 13
                // While loop
                $region83: #{_mlp_forward_padded.1} parent=81 // loop_pre_header
                  _
                $region84: #{_mlp_forward_padded.1} parent=81 // loop_header
                  %s852 = sphi 0, %s854
                  %p853 = scmp.ge.s32.totalorder %s852, %s849
                  %s857 = sphi 0, %s888
                  %s858 = sphi %s757, %s891
                  %s859 = sphi %s768, %s892
                $region85: #{_mlp_forward_padded.1} parent=81 // loop_header_branch
                  %856 = sbr.rel (%p853) target = $region89
                $region86: #{_mlp_forward_padded.1} parent=81 // loop_body
                  %v860 = vld [vmem:[%s858] sm:$0xff]
                  %861 = vst [vmem:[%s859] sm:$0xff] %v860
                  %v862 = vld [vmem:[%s858 + $0x8] sm:$0xff]
                  %863 = vst [vmem:[%s859 + $0x8] sm:$0xff] %v862
                  %v864 = vld [vmem:[%s858 + $0x10] sm:$0xff]
                  %865 = vst [vmem:[%s859 + $0x10] sm:$0xff] %v864
                  %v866 = vld [vmem:[%s858 + $0x18] sm:$0xff]
                  %867 = vst [vmem:[%s859 + $0x18] sm:$0xff] %v866
                  %v868 = vld [vmem:[%s858 + $0x20] sm:$0xff]
                  %869 = vst [vmem:[%s859 + $0x20] sm:$0xff] %v868
                  %v870 = vld [vmem:[%s858 + $0x28] sm:$0xff]
                  %871 = vst [vmem:[%s859 + $0x28] sm:$0xff] %v870
                  %v872 = vld [vmem:[%s858 + $0x30] sm:$0xff]
                  %873 = vst [vmem:[%s859 + $0x30] sm:$0xff] %v872
                  %v874 = vld [vmem:[%s858 + $0x38] sm:$0xff]
                  %875 = vst [vmem:[%s859 + $0x38] sm:$0xff] %v874
                  %v876 = vld [vmem:[%s858 + $0x40] sm:$0xff]
                  %877 = vst [vmem:[%s859 + $0x40] sm:$0xff] %v876
                  %v878 = vld [vmem:[%s858 + $0x48] sm:$0xff]
                  %879 = vst [vmem:[%s859 + $0x48] sm:$0xff] %v878
                  %v880 = vld [vmem:[%s858 + $0x50] sm:$0xff]
                  %881 = vst [vmem:[%s859 + $0x50] sm:$0xff] %v880
                  %v882 = vld [vmem:[%s858 + $0x58] sm:$0xff]
                  %883 = vst [vmem:[%s859 + $0x58] sm:$0xff] %v882
                  %v884 = vld [vmem:[%s858 + $0x60] sm:$0xff]
                  %885 = vst [vmem:[%s859 + $0x60] sm:$0xff] %v884
                  %s886 = sadd.s32 1, %s857
                  %p887 = scmp.ge.s32.totalorder %s886, %s849
                  %s888 = scalar_select %p887, 0, %s886
                  %s889 = smul.u32 %s888, 104
                  %s890 = smul.u32 %s888, 104
                  %s891 = scalar_lea.vmem %s757, %s889 [#allocation3]
                  %s892 = scalar_lea.vmem %s768, %s890
                $region87: #{_mlp_forward_padded.1} parent=81 // loop_footer
                  %s854 = sadd.s32 %s852, 1
                $region88: #{_mlp_forward_padded.1} parent=81 // loop_footer_branch
                  %851 = sbr.rel target = $region84
                $region89: #{_mlp_forward_padded.1} parent=81 // loop_exit
                  _
                %s893 = sdiv.u32.pop %s764, 13
                %s894 = srem.u32.pop %s764, 13
                %s895 = smul.u32 %s893, 13
                %s896 = smul.u32 8, %s895
                %s897 = scalar_lea.vmem %s757, %s896 [#allocation3]
                %s898 = smul.u32 8, %s895
                %s899 = scalar_lea.vmem %s768, %s898
                // While loop
                $region90: #{_mlp_forward_padded.1} parent=81 // loop_pre_header
                  _
                $region91: #{_mlp_forward_padded.1} parent=81 // loop_header
                  %s901 = sphi 0, %s903
                  %p902 = scmp.ge.s32.totalorder %s901, %s894
                  %s906 = sphi 0, %s913
                  %s907 = sphi %s897, %s916
                  %s908 = sphi %s899, %s917
                $region92: #{_mlp_forward_padded.1} parent=81 // loop_header_branch
                  %905 = sbr.rel (%p902) target = $region96
                $region93: #{_mlp_forward_padded.1} parent=81 // loop_body
                  %v909 = vld [vmem:[%s907] sm:$0xff]
                  %910 = vst [vmem:[%s908] sm:$0xff] %v909
                  %s911 = sadd.s32 1, %s906
                  %p912 = scmp.ge.s32.totalorder %s911, %s894
                  %s913 = scalar_select %p912, 0, %s911
                  %s914 = smul.u32 %s913, 8
                  %s915 = smul.u32 %s913, 8
                  %s916 = scalar_lea.vmem %s897, %s914 [#allocation3]
                  %s917 = scalar_lea.vmem %s899, %s915
                $region94: #{_mlp_forward_padded.1} parent=81 // loop_footer
                  %s903 = sadd.s32 %s901, 1
                $region95: #{_mlp_forward_padded.1} parent=81 // loop_footer_branch
                  %900 = sbr.rel target = $region91
                $region96: #{_mlp_forward_padded.1} parent=81 // loop_exit
                  _
              $region82: #{_mlp_forward_padded.1} parent=59 // pred_fallthru
                _
              // Predicated region
              $region97: #{_mlp_forward_padded.1} parent=59 // pred_check
                _
              $region98: #{_mlp_forward_padded.1} parent=59 // pred_check_branch
                %919 = sbr.rel target = $region100
              $region99: #{_mlp_forward_padded.1} parent=59 // pred_region
                _
              $region100: #{_mlp_forward_padded.1} parent=59 // pred_fallthru
                _
            $region60: #{_mlp_forward_padded.1} parent=55 // pred_fallthru
              _
            // Predicated region
            $region61: #{_mlp_forward_padded.1} parent=55 // pred_check
              _
            $region62: #{_mlp_forward_padded.1} parent=55 // pred_check_branch
              %775 = sbr.rel target = $region64
            $region63: #{_mlp_forward_padded.1} parent=55 // pred_region
              %s777 = ssub.s32 256, 1
              %s778 = sdiv.u32.pop %s764, 13
              %s779 = srem.u32.pop %s764, 13
              // While loop
              $region65: #{_mlp_forward_padded.1} parent=63 // loop_pre_header
                _
              $region66: #{_mlp_forward_padded.1} parent=63 // loop_header
                %s781 = sphi 0, %s783
                %p782 = scmp.ge.s32.totalorder %s781, %s778
                %s786 = sphi 0, %s817
                %s787 = sphi %s757, %s820
                %s788 = sphi %s768, %s821
              $region67: #{_mlp_forward_padded.1} parent=63 // loop_header_branch
                %785 = sbr.rel (%p782) target = $region71
              $region68: #{_mlp_forward_padded.1} parent=63 // loop_body
                %v789 = vld [vmem:[%s787] sm:%s777]
                %790 = vst [vmem:[%s788] sm:%s777] %v789
                %v791 = vld [vmem:[%s787 + $0x8] sm:%s777]
                %792 = vst [vmem:[%s788 + $0x8] sm:%s777] %v791
                %v793 = vld [vmem:[%s787 + $0x10] sm:%s777]
                %794 = vst [vmem:[%s788 + $0x10] sm:%s777] %v793
                %v795 = vld [vmem:[%s787 + $0x18] sm:%s777]
                %796 = vst [vmem:[%s788 + $0x18] sm:%s777] %v795
                %v797 = vld [vmem:[%s787 + $0x20] sm:%s777]
                %798 = vst [vmem:[%s788 + $0x20] sm:%s777] %v797
                %v799 = vld [vmem:[%s787 + $0x28] sm:%s777]
                %800 = vst [vmem:[%s788 + $0x28] sm:%s777] %v799
                %v801 = vld [vmem:[%s787 + $0x30] sm:%s777]
                %802 = vst [vmem:[%s788 + $0x30] sm:%s777] %v801
                %v803 = vld [vmem:[%s787 + $0x38] sm:%s777]
                %804 = vst [vmem:[%s788 + $0x38] sm:%s777] %v803
                %v805 = vld [vmem:[%s787 + $0x40] sm:%s777]
                %806 = vst [vmem:[%s788 + $0x40] sm:%s777] %v805
                %v807 = vld [vmem:[%s787 + $0x48] sm:%s777]
                %808 = vst [vmem:[%s788 + $0x48] sm:%s777] %v807
                %v809 = vld [vmem:[%s787 + $0x50] sm:%s777]
                %810 = vst [vmem:[%s788 + $0x50] sm:%s777] %v809
                %v811 = vld [vmem:[%s787 + $0x58] sm:%s777]
                %812 = vst [vmem:[%s788 + $0x58] sm:%s777] %v811
                %v813 = vld [vmem:[%s787 + $0x60] sm:%s777]
                %814 = vst [vmem:[%s788 + $0x60] sm:%s777] %v813
                %s815 = sadd.s32 1, %s786
                %p816 = scmp.ge.s32.totalorder %s815, %s778
                %s817 = scalar_select %p816, 0, %s815
                %s818 = smul.u32 %s817, 104
                %s819 = smul.u32 %s817, 104
                %s820 = scalar_lea.vmem %s757, %s818 [#allocation3]
                %s821 = scalar_lea.vmem %s768, %s819
              $region69: #{_mlp_forward_padded.1} parent=63 // loop_footer
                %s783 = sadd.s32 %s781, 1
              $region70: #{_mlp_forward_padded.1} parent=63 // loop_footer_branch
                %780 = sbr.rel target = $region66
              $region71: #{_mlp_forward_padded.1} parent=63 // loop_exit
                _
              %s822 = sdiv.u32.pop %s764, 13
              %s823 = srem.u32.pop %s764, 13
              %s824 = smul.u32 %s822, 13
              %s825 = smul.u32 8, %s824
              %s826 = scalar_lea.vmem %s757, %s825 [#allocation3]
              %s827 = smul.u32 8, %s824
              %s828 = scalar_lea.vmem %s768, %s827
              // While loop
              $region72: #{_mlp_forward_padded.1} parent=63 // loop_pre_header
                _
              $region73: #{_mlp_forward_padded.1} parent=63 // loop_header
                %s830 = sphi 0, %s832
                %p831 = scmp.ge.s32.totalorder %s830, %s823
                %s835 = sphi 0, %s842
                %s836 = sphi %s826, %s845
                %s837 = sphi %s828, %s846
              $region74: #{_mlp_forward_padded.1} parent=63 // loop_header_branch
                %834 = sbr.rel (%p831) target = $region78
              $region75: #{_mlp_forward_padded.1} parent=63 // loop_body
                %v838 = vld [vmem:[%s836] sm:%s777]
                %839 = vst [vmem:[%s837] sm:%s777] %v838
                %s840 = sadd.s32 1, %s835
                %p841 = scmp.ge.s32.totalorder %s840, %s823
                %s842 = scalar_select %p841, 0, %s840
                %s843 = smul.u32 %s842, 8
                %s844 = smul.u32 %s842, 8
                %s845 = scalar_lea.vmem %s826, %s843 [#allocation3]
                %s846 = scalar_lea.vmem %s828, %s844
              $region76: #{_mlp_forward_padded.1} parent=63 // loop_footer
                %s832 = sadd.s32 %s830, 1
              $region77: #{_mlp_forward_padded.1} parent=63 // loop_footer_branch
                %829 = sbr.rel target = $region73
              $region78: #{_mlp_forward_padded.1} parent=63 // loop_exit
                _
            $region64: #{_mlp_forward_padded.1} parent=55 // pred_fallthru
              _
          $region56: #{_mlp_forward_padded.1} parent=51 // pred_fallthru
            _
          %920 = vnop
        $region52: #{_mlp_forward_padded.1} parent=39 // pred_fallthru
          _
      $region40: #{_mlp_forward_padded.1} parent=5 // pred_fallthru
        _
      %p921 = scmp.le.s32.totalorder 2, %s11
      // Predicated region
      $region101: #{_mlp_forward_padded.1} parent=5 // pred_check
        %p922 = pneg %p921
      $region102: #{_mlp_forward_padded.1} parent=5 // pred_check_branch
        %924 = sbr.rel (%p922) target = $region104
      $region103: #{_mlp_forward_padded.1} parent=5 // pred_region
        %s925 = ssub.s32 %s11, 2
        // Predicated region
        $region105: #{_mlp_forward_padded.1} parent=103 // pred_check
          %p926 = pneg %p177
        $region106: #{_mlp_forward_padded.1} parent=103 // pred_check_branch
          %928 = sbr.rel (%p926) target = $region108
        $region107: #{_mlp_forward_padded.1} parent=103 // pred_region
          %s929 = sand.u32 %s162, 1
          %s930 = sand.u32 %s162, 1
          %s931 = smul.addr %s930, 104
          %s932 = scalar_lea.vmem [#allocation3], %s931
        $region108: #{_mlp_forward_padded.1} parent=103 // pred_fallthru
          _
      $region104: #{_mlp_forward_padded.1} parent=5 // pred_fallthru
        _
    $region6: #{_mlp_forward_padded.1} parent=1 // loop_footer
      %s15 = sadd.s32 1, %s11
    $region7: #{_mlp_forward_padded.1} parent=1 // loop_footer_branch
      %10 = sbr.rel target = $region3
    $region8: #{_mlp_forward_padded.1} parent=1 // loop_exit
      _

// kernel: _mlp_forward_padded.1
$region0: #{_mlp_forward_padded.1}
  #allocation0 [shape = 'u32[]', space=smem, size = 0x4, offset = 0x4, fixed_abs, tag = 'smem constant byte address 0x4 - core index']
  #allocation1 [shape = 'u32[144,128]{1,0:T(1,128)}', space=vmem, size = 0x12000, scoped, tag = 'internal scratch']
  #allocation2 [shape = 'f32[104,128]{1,0:T(8,128)}', space=vmem, size = 0xd000, scoped, tag = 'scratch operand']
  %s0 = inlined_call_operand.vmem [shape: f32[200,128], index: 0, kind: input, shape index: {}]
  %s1 = inlined_call_operand.vmem [shape: f32[128,128], index: 1, kind: input, shape index: {}]
  %s2 = inlined_call_operand.vmem [shape: f32[1,128], index: 2, kind: input, shape index: {}]
  %s3 = inlined_call_operand.vmem [shape: f32[128,128], index: 3, kind: input, shape index: {}]
  %s4 = inlined_call_operand.vmem [shape: f32[1,128], index: 4, kind: input, shape index: {}]
  %s5 = inlined_call_operand.vmem [shape: f32[200,128], index: 5, kind: output, shape index: {}]
  %s6 = sld [smem:[#allocation0]]
  $region109: #{_mlp_forward_padded.1} parent=0
    _
  %s8 = ssub.s32 1, %s6
  %s9 = scalar_select 0, %s8, %s6
  $region1: #{_mlp_forward_padded.1} parent=0
    #allocation3 [shape = 'u8[106496]{0}', space=vmem, size = 0x1a000, scoped, tag = 'output window, operand 0']
    loop: start=0, step=1, limit=4
    $region2: #{_mlp_forward_padded.1} parent=1 // loop_pre_header
      _
    $region3: #{_mlp_forward_padded.1} parent=1 // loop_header
      %s11 = sphi 0, %s15
      %p12 = scmp.ge.s32.totalorder %s11, 4
      %s18 = sphi 0, %s30
      %s19 = sphi 0, %s26
      %s20 = sphi 0, %s18
      %s21 = sphi 0, %s19
      %s22 = sphi 0, %s20
      %s23 = sphi 0, %s21
      %s33 = sphi 0, %s35
      %s36 = sphi 0, %s33
      %s37 = sphi 0, %s36
      %s53 = sphi 0, %s37
      %s59 = sphi 0, %s61
      %s62 = sphi 0, %s59
      %s63 = sphi 0, %s62
      %s79 = sphi 0, %s63
      %s85 = sphi 0, %s87
      %s88 = sphi 0, %s85
      %s89 = sphi 0, %s88
      %s105 = sphi 0, %s89
      %s111 = sphi 0, %s113
      %s114 = sphi 0, %s111
      %s115 = sphi 0, %s114
      %s131 = sphi 0, %s115
      %s135 = sphi 0, %s135
      %s137 = sphi 0, %s135
      %s138 = sphi 0, %s137
      %s152 = sphi 0, %s138
      %s158 = sphi 0, %s160
      %s161 = sphi 0, %s158
      %s162 = sphi 0, %s161
      %s178 = sphi 0, %s162
    $region4: #{_mlp_forward_padded.1} parent=1 // loop_header_branch
      %14 = sbr.rel (%p12) target = $region8
    $region5: #{_mlp_forward_padded.1} parent=1 // loop_body
      %s16 = ssub.s32 %s11, 1
      %s17 = ssub.s32 %s11, 2
      %s24 = sadd.s32 1, %s19
      %p25 = scmp.ge.s32.totalorder %s24, 1
      %s26 = scalar_select %p25, 0, %s24
      %s27 = sadd.s32 1, %s18
      %s28 = scalar_select %p25, %s27, %s18
      %p29 = scmp.ge.s32.totalorder %s28, 2
      %s30 = scalar_select %p29, 0, %s28
      %s31 = ssub.s32 %s18, %s30
      %p32 = scmp.eq.s32.totalorder %s31, 0
      %s34 = sadd.s32 %s33, 1
      %s35 = scalar_select %p32, %s33, %s34
      %p38 = pneg %p32
      %p39 = scmp.eq.s32.totalorder %s11, 1
      %p40 = por %p38, %p39
      %p41 = scmp.ne.s32.totalorder %s33, %s36
      %p42 = scmp.eq.s32.totalorder %s11, 0
      %p43 = por %p41, %p42
      %p44 = scmp.ne.s32.totalorder %s33, %s36
      %p45 = scmp.eq.s32.totalorder %s16, 1
      %p46 = por %p44, %p45
      %p47 = scmp.ne.s32.totalorder %s36, %s37
      %p48 = scmp.eq.s32.totalorder %s16, 0
      %p49 = por %p47, %p48
      %p50 = scmp.ne.s32.totalorder %s36, %s37
      %p51 = scmp.eq.s32.totalorder %s17, 1
      %p52 = por %p50, %p51
      %p54 = scmp.ne.s32.totalorder %s37, %s53
      %p55 = scmp.eq.s32.totalorder %s17, 0
      %p56 = por %p54, %p55
      %s57 = ssub.s32 %s19, %s26
      %p58 = scmp.eq.s32.totalorder %s57, 0
      %s60 = sadd.s32 %s59, 1
      %s61 = scalar_select %p58, %s59, %s60
      %p64 = pneg %p58
      %p65 = scmp.eq.s32.totalorder %s11, 1
      %p66 = por %p64, %p65
      %p67 = scmp.ne.s32.totalorder %s59, %s62
      %p68 = scmp.eq.s32.totalorder %s11, 0
      %p69 = por %p67, %p68
      %p70 = scmp.ne.s32.totalorder %s59, %s62
      %p71 = scmp.eq.s32.totalorder %s16, 1
      %p72 = por %p70, %p71
      %p73 = scmp.ne.s32.totalorder %s62, %s63
      %p74 = scmp.eq.s32.totalorder %s16, 0
      %p75 = por %p73, %p74
      %p76 = scmp.ne.s32.totalorder %s62, %s63
      %p77 = scmp.eq.s32.totalorder %s17, 1
      %p78 = por %p76, %p77
      %p80 = scmp.ne.s32.totalorder %s63, %s79
      %p81 = scmp.eq.s32.totalorder %s17, 0
      %p82 = por %p80, %p81
      %s83 = ssub.s32 %s19, %s26
      %p84 = scmp.eq.s32.totalorder %s83, 0
      %s86 = sadd.s32 %s85, 1
      %s87 = scalar_select %p84, %s85, %s86
      %p90 = pneg %p84
      %p91 = scmp.eq.s32.totalorder %s11, 1
      %p92 = por %p90, %p91
      %p93 = scmp.ne.s32.totalorder %s85, %s88
      %p94 = scmp.eq.s32.totalorder %s11, 0
      %p95 = por %p93, %p94
      %p96 = scmp.ne.s32.totalorder %s85, %s88
      %p97 = scmp.eq.s32.totalorder %s16, 1
      %p98 = por %p96, %p97
      %p99 = scmp.ne.s32.totalorder %s88, %s89
      %p100 = scmp.eq.s32.totalorder %s16, 0
      %p101 = por %p99, %p100
      %p102 = scmp.ne.s32.totalorder %s88, %s89
      %p103 = scmp.eq.s32.totalorder %s17, 1
      %p104 = por %p102, %p103
      %p106 = scmp.ne.s32.totalorder %s89, %s105
      %p107 = scmp.eq.s32.totalorder %s17, 0
      %p108 = por %p106, %p107
      %s109 = ssub.s32 %s19, %s26
      %p110 = scmp.eq.s32.totalorder %s109, 0
      %s112 = sadd.s32 %s111, 1
      %s113 = scalar_select %p110, %s111, %s112
      %p116 = pneg %p110
      %p117 = scmp.eq.s32.totalorder %s11, 1
      %p118 = por %p116, %p117
      %p119 = scmp.ne.s32.totalorder %s111, %s114
      %p120 = scmp.eq.s32.totalorder %s11, 0
      %p121 = por %p119, %p120
      %p122 = scmp.ne.s32.totalorder %s111, %s114
      %p123 = scmp.eq.s32.totalorder %s16, 1
      %p124 = por %p122, %p123
      %p125 = scmp.ne.s32.totalorder %s114, %s115
      %p126 = scmp.eq.s32.totalorder %s16, 0
      %p127 = por %p125, %p126
      %p128 = scmp.ne.s32.totalorder %s114, %s115
      %p129 = scmp.eq.s32.totalorder %s17, 1
      %p130 = por %p128, %p129
      %p132 = scmp.ne.s32.totalorder %s115, %s131
      %p133 = scmp.eq.s32.totalorder %s17, 0
      %p134 = por %p132, %p133
      %s136 = sadd.s32 %s135, 1
      %p139 = scmp.eq.s32.totalorder %s11, 1
      %p140 = scmp.ne.s32.totalorder %s135, %s137
      %p141 = scmp.eq.s32.totalorder %s11, 0
      %p142 = por %p140, %p141
      %p143 = scmp.ne.s32.totalorder %s135, %s137
      %p144 = scmp.eq.s32.totalorder %s16, 1
      %p145 = por %p143, %p144
      %p146 = scmp.ne.s32.totalorder %s137, %s138
      %p147 = scmp.eq.s32.totalorder %s16, 0
      %p148 = por %p146, %p147
      %p149 = scmp.ne.s32.totalorder %s137, %s138
      %p150 = scmp.eq.s32.totalorder %s17, 1
      %p151 = por %p149, %p150
      %p153 = scmp.ne.s32.totalorder %s138, %s152
      %p154 = scmp.eq.s32.totalorder %s17, 0
      %p155 = por %p153, %p154
      %s156 = ssub.s32 %s18, %s30
      %p157 = scmp.eq.s32.totalorder %s156, 0
      %s159 = sadd.s32 %s158, 1
      %s160 = scalar_select %p157, %s158, %s159
      %p163 = pneg %p157
      %p164 = scmp.eq.s32.totalorder %s11, 1
      %p165 = por %p163, %p164
      %p166 = scmp.ne.s32.totalorder %s158, %s161
      %p167 = scmp.eq.s32.totalorder %s11, 0
      %p168 = por %p166, %p167
      %p169 = scmp.ne.s32.totalorder %s158, %s161
      %p170 = scmp.eq.s32.totalorder %s16, 1
      %p171 = por %p169, %p170
      %p172 = scmp.ne.s32.totalorder %s161, %s162
      %p173 = scmp.eq.s32.totalorder %s16, 0
      %p174 = por %p172, %p173
      %p175 = scmp.ne.s32.totalorder %s161, %s162
      %p176 = scmp.eq.s32.totalorder %s17, 1
      %p177 = por %p175, %p176
      %p179 = scmp.ne.s32.totalorder %s162, %s178
      %p180 = scmp.eq.s32.totalorder %s17, 0
      %p181 = por %p179, %p180
      %p182 = scmp.le.s32.totalorder 1, %s11
      %p183 = scmp.lt.s32.totalorder %s11, 3
      %p184 = pnand %p182, %p183
      %p185 = pneg %p184
      // Predicated region
      $region9: #{_mlp_forward_padded.1} parent=5 // pred_check
        _
      $region10: #{_mlp_forward_padded.1} parent=5 // pred_check_branch
        %187 = sbr.rel (%p184) target = $region12
      $region11: #{_mlp_forward_padded.1} parent=5 // pred_region
        %s188 = ssub.s32 %s11, 1
        // Predicated region
        $region13: #{_mlp_forward_padded.1} parent=11 // pred_check
          %p189 = pneg %p75
        $region14: #{_mlp_forward_padded.1} parent=11 // pred_check_branch
          %191 = sbr.rel (%p189) target = $region16
        $region15: #{_mlp_forward_padded.1} parent=11 // pred_region
          %p192 = scmp.lt.s32.totalorder %s21, 0
          %s193 = scalar_select %p192, %s21, 0
          %s194 = smul.addr %s193, 8
          %s195 = scalar_lea.vmem %s1, %s194
        $region16: #{_mlp_forward_padded.1} parent=11 // pred_fallthru
          _
        // Predicated region
        $region17: #{_mlp_forward_padded.1} parent=11 // pred_check
          %p196 = pneg %p101
        $region18: #{_mlp_forward_padded.1} parent=11 // pred_check_branch
          %198 = sbr.rel (%p196) target = $region20
        $region19: #{_mlp_forward_padded.1} parent=11 // pred_region
          %p199 = scmp.lt.s32.totalorder %s21, 0
          %s200 = scalar_select %p199, %s21, 0
          %s201 = scalar_lea.vmem %s2, %s200
        $region20: #{_mlp_forward_padded.1} parent=11 // pred_fallthru
          _
        // Predicated region
        $region21: #{_mlp_forward_padded.1} parent=11 // pred_check
          %p202 = pneg %p127
        $region22: #{_mlp_forward_padded.1} parent=11 // pred_check_branch
          %204 = sbr.rel (%p202) target = $region24
        $region23: #{_mlp_forward_padded.1} parent=11 // pred_region
          %s205 = smul.u32 16, %s21
          %p206 = scmp.lt.s32.totalorder %s205, 15
          %s207 = scalar_select %p206, %s205, 15
          %s208 = smul.addr %s207, 8
          %s209 = scalar_lea.vmem %s3, %s208
          %s210 = smul.u32 16, %s21
        $region24: #{_mlp_forward_padded.1} parent=11 // pred_fallthru
          _
        // Predicated region
        $region25: #{_mlp_forward_padded.1} parent=11 // pred_check
          %p211 = pneg %p148
        $region26: #{_mlp_forward_padded.1} parent=11 // pred_check_branch
          %213 = sbr.rel (%p211) target = $region28
        $region27: #{_mlp_forward_padded.1} parent=11 // pred_region
          _
        $region28: #{_mlp_forward_padded.1} parent=11 // pred_fallthru
          _
      $region12: #{_mlp_forward_padded.1} parent=5 // pred_fallthru
        _
      %p214 = scmp.lt.s32.totalorder %s11, 2
      // Predicated region
      $region29: #{_mlp_forward_padded.1} parent=5 // pred_check
        %p215 = pneg %p214
      $region30: #{_mlp_forward_padded.1} parent=5 // pred_check_branch
        %217 = sbr.rel (%p215) target = $region32
      $region31: #{_mlp_forward_padded.1} parent=5 // pred_region
        // Predicated region
        $region33: #{_mlp_forward_padded.1} parent=31 // pred_check
          %p218 = pneg %p43
        $region34: #{_mlp_forward_padded.1} parent=31 // pred_check_branch
          %220 = sbr.rel (%p218) target = $region36
        $region35: #{_mlp_forward_padded.1} parent=31 // pred_region
          %s221 = smul.u32 13, %s18
          %s222 = ssub.s32 25, %s221
          %p223 = scmp.lt.s32.totalorder %s222, 13
          %s224 = scalar_select %p223, %s222, 13
          %s225 = smul.u32 128, %s224
          %p226 = scmp.lt.s32.totalorder %s221, 24
          %s227 = scalar_select %p226, %s221, 24
          %s228 = smul.addr %s227, 8
          %s229 = scalar_lea.vmem %s0, %s228
          %s230 = smul.u32 13, %s18
          %s231 = ssub.s32 25, %s230
          %p232 = scmp.lt.s32.totalorder %s231, 13
          %s233 = scalar_select %p232, %s231, 13
          %s234 = smul.u32 128, %s233
        $region36: #{_mlp_forward_padded.1} parent=31 // pred_fallthru
          _
      $region32: #{_mlp_forward_padded.1} parent=5 // pred_fallthru
        _
      %p235 = scmp.le.s32.totalorder 1, %s11
      %p236 = scmp.lt.s32.totalorder %s11, 3
      %p237 = pnand %p235, %p236
      %p238 = pneg %p237
      // Predicated region
      $region37: #{_mlp_forward_padded.1} parent=5 // pred_check
        _
      $region38: #{_mlp_forward_padded.1} parent=5 // pred_check_branch
        %240 = sbr.rel (%p237) target = $region40
      $region39: #{_mlp_forward_padded.1} parent=5 // pred_region
        %s241 = ssub.s32 %s11, 1
        %s242 = smul.u32 13, %s20
        %s243 = ssub.s32 25, %s242
        %p244 = scmp.lt.s32.totalorder %s243, 13
        %s245 = scalar_select %p244, %s243, 13
        %s246 = smul.u32 128, %s245
        %p247 = scmp.lt.s32.totalorder %s242, 24
        %s248 = scalar_select %p247, %s242, 24
        %s249 = smul.addr %s248, 8
        %s250 = scalar_lea.vmem %s0, %s249
        %p251 = pneg %p49
        %p252 = pneg %p46
        %p253 = scmp.lt.s32.totalorder %s21, 0
        %s254 = scalar_select %p253, %s21, 0
        %s255 = smul.addr %s254, 8
        %s256 = scalar_lea.vmem %s1, %s255
        %p257 = pneg %p75
        %p258 = pneg %p72
        %p259 = scmp.lt.s32.totalorder %s21, 0
        %s260 = scalar_select %p259, %s21, 0
        %s261 = scalar_lea.vmem %s2, %s260
        %p262 = pneg %p101
        %p263 = pneg %p98
        %s264 = smul.u32 16, %s21
        %p265 = scmp.lt.s32.totalorder %s264, 15
        %s266 = scalar_select %p265, %s264, 15
        %s267 = smul.addr %s266, 8
        %s268 = scalar_lea.vmem %s3, %s267
        %p269 = pneg %p127
        %p270 = pneg %p124
        %p271 = pneg %p148
        %p272 = pneg %p145
        %p273 = pneg %p174
        %p274 = pneg %p171
        %s275 = sand.u32 %s161, 1
        %s276 = sand.u32 %s161, 1
        %s277 = smul.addr %s276, 104
        %s278 = scalar_lea.vmem [#allocation3], %s277
        %s279 = smul.u32 13, %s20
        %s280 = ssub.s32 25, %s279
        %p281 = scmp.lt.s32.totalorder %s280, 13
        %s282 = scalar_select %p281, %s280, 13
        %s283 = smul.u32 128, %s282
        %p284 = scmp.lt.s32.totalorder %s279, 24
        %s285 = scalar_select %p284, %s279, 24
        %s286 = smul.addr %s285, 8
        %s287 = scalar_lea.vmem %s0, %s286
        %s288 = smul.u32 13, %s20
        %s289 = ssub.s32 25, %s288
        %p290 = scmp.lt.s32.totalorder %s289, 13
        %s291 = scalar_select %p290, %s289, 13
        %s292 = smul.u32 128, %s291
        %p293 = scmp.lt.s32.totalorder %s21, 0
        %s294 = scalar_select %p293, %s21, 0
        %s295 = smul.addr %s294, 8
        %s296 = scalar_lea.vmem %s1, %s295
        %p297 = scmp.lt.s32.totalorder %s21, 0
        %s298 = scalar_select %p297, %s21, 0
        %s299 = scalar_lea.vmem %s2, %s298
        %s300 = smul.u32 16, %s21
        %p301 = scmp.lt.s32.totalorder %s300, 15
        %s302 = scalar_select %p301, %s300, 15
        %s303 = smul.addr %s302, 8
        %s304 = scalar_lea.vmem %s3, %s303
        %s305 = smul.u32 16, %s21
        %s306 = smul.u32 13, %s20
        %s307 = ssub.s32 25, %s306
        %p308 = scmp.lt.s32.totalorder %s307, 13
        %s309 = scalar_select %p308, %s307, 13
        %s310 = smul.u32 128, %s309
        %p311 = scmp.eq.s32.totalorder %s21, 0
        // Predicated region
        $region41: #{_mlp_forward_padded.1} parent=39 // pred_check
          %p312 = pneg %p311
        $region42: #{_mlp_forward_padded.1} parent=39 // pred_check_branch
          %314 = sbr.rel (%p312) target = $region44
        $region43: #{_mlp_forward_padded.1} parent=39 // pred_region
          %315 = vst [vmem:[#allocation2] sm:$0xff] 0.0
          %316 = vst [vmem:[#allocation2 + $0x8] sm:$0xff] 0.0
          %317 = vst [vmem:[#allocation2 + $0x10] sm:$0xff] 0.0
          %318 = vst [vmem:[#allocation2 + $0x18] sm:$0xff] 0.0
          %319 = vst [vmem:[#allocation2 + $0x20] sm:$0xff] 0.0
          %320 = vst [vmem:[#allocation2 + $0x28] sm:$0xff] 0.0
          %321 = vst [vmem:[#allocation2 + $0x30] sm:$0xff] 0.0
          %322 = vst [vmem:[#allocation2 + $0x38] sm:$0xff] 0.0
          %323 = vst [vmem:[#allocation2 + $0x40] sm:$0xff] 0.0
          %324 = vst [vmem:[#allocation2 + $0x48] sm:$0xff] 0.0
          %325 = vst [vmem:[#allocation2 + $0x50] sm:$0xff] 0.0
          %326 = vst [vmem:[#allocation2 + $0x58] sm:$0xff] 0.0
          %327 = vst [vmem:[#allocation2 + $0x60] sm:$0xff] 0.0
        $region44: #{_mlp_forward_padded.1} parent=39 // pred_fallthru
          _
        %v328 = vld [vmem:[%s287] sm:$0xff]
        %v329 = vld [vmem:[%s287 + $0x8] sm:$0xff]
        %v330 = vld [vmem:[%s287 + $0x10] sm:$0xff]
        %v331 = vld [vmem:[%s287 + $0x18] sm:$0xff]
        %v332 = vld [vmem:[%s287 + $0x20] sm:$0xff]
        %v333 = vld [vmem:[%s287 + $0x28] sm:$0xff]
        %v334 = vld [vmem:[%s287 + $0x30] sm:$0xff]
        %v335 = vld [vmem:[%s287 + $0x38] sm:$0xff]
        %v336 = vld [vmem:[%s287 + $0x40] sm:$0xff]
        %v337 = vld [vmem:[%s287 + $0x48] sm:$0xff]
        %v338 = vld [vmem:[%s287 + $0x50] sm:$0xff]
        %v339 = vld [vmem:[%s287 + $0x58] sm:$0xff]
        %v340 = vld [vmem:[%s287 + $0x60] sm:$0xff]
        %v341 = vld [vmem:[%s296] sm:$0xff]
        %v342 = vld [vmem:[%s296 + $0x8] sm:$0xff]
        %v343 = vld [vmem:[%s296 + $0x10] sm:$0xff]
        %v344 = vld [vmem:[%s296 + $0x18] sm:$0xff]
        %v345 = vld [vmem:[%s296 + $0x20] sm:$0xff]
        %v346 = vld [vmem:[%s296 + $0x28] sm:$0xff]
        %v347 = vld [vmem:[%s296 + $0x30] sm:$0xff]
        %v348 = vld [vmem:[%s296 + $0x38] sm:$0xff]
        %v349 = vld [vmem:[%s296 + $0x40] sm:$0xff]
        %v350 = vld [vmem:[%s296 + $0x48] sm:$0xff]
        %v351 = vld [vmem:[%s296 + $0x50] sm:$0xff]
        %v352 = vld [vmem:[%s296 + $0x58] sm:$0xff]
        %v353 = vld [vmem:[%s296 + $0x60] sm:$0xff]
        %v354 = vld [vmem:[%s296 + $0x68] sm:$0xff]
        %v355 = vld [vmem:[%s296 + $0x70] sm:$0xff]
        %v356 = vld [vmem:[%s296 + $0x78] sm:$0xff]
        %v357 = vld [vmem:[%s299] sm:$0x1]
        %v359 = vlaneseq
        %v360 = vshrl.u32 %v359, 7
        %v361 = vsub.s32 0, %v360
        %v362 = vrot.slane %v357, %v361
        %364 = vmatprep.subr.mxu0 0.0
        %365 = vmatpush1.msra.mxu0 %v356
        %366 = vmatprep.subr.mxu0 0.0
        %367 = vmatpush1.msra.mxu0 %v355
        %368 = vmatprep.subr.mxu0 0.0
        %369 = vmatpush1.msra.mxu0 %v354
        %370 = vmatprep.subr.mxu0 0.0
        %371 = vmatpush1.msra.mxu0 %v353
        %372 = vmatprep.subr.mxu0 0.0
        %373 = vmatpush1.msra.mxu0 %v352
        %374 = vmatprep.subr.mxu0 0.0
        %375 = vmatpush1.msra.mxu0 %v351
        %376 = vmatprep.subr.mxu0 0.0
        %377 = vmatpush1.msra.mxu0 %v350
        %378 = vmatprep.subr.mxu0 0.0
        %379 = vmatpush1.msra.mxu0 %v349
        %380 = vmatprep.subr.mxu0 0.0
        %381 = vmatpush1.msra.mxu0 %v348
        %382 = vmatprep.subr.mxu0 0.0
        %383 = vmatpush1.msra.mxu0 %v347
        %384 = vmatprep.subr.mxu0 0.0
        %385 = vmatpush1.msra.mxu0 %v346
        %386 = vmatprep.subr.mxu0 0.0
        %387 = vmatpush1.msra.mxu0 %v345
        %388 = vmatprep.subr.mxu0 0.0
        %389 = vmatpush1.msra.mxu0 %v344
        %390 = vmatprep.subr.mxu0 0.0
        %391 = vmatpush1.msra.mxu0 %v343
        %392 = vmatprep.subr.mxu0 0.0
        %393 = vmatpush1.msra.mxu0 %v342
        %394 = vmatprep.subr.mxu0 0.0
        %395 = vmatpush1.msra.mxu0 %v341
        %396 = vmatprep.subr.mxu0 0.0
        %397 = vmatpush2.msra.mxu0 0.0
        %398 = vmatprep.subr.mxu0 0.0
        %399 = vmatpush2.msra.mxu0 0.0
        %400 = vmatprep.subr.mxu0 0.0
        %401 = vmatpush2.msra.mxu0 0.0
        %402 = vmatprep.subr.mxu0 0.0
        %403 = vmatpush2.msra.mxu0 0.0
        %404 = vmatprep.subr.mxu0 0.0
        %405 = vmatpush2.msra.mxu0 0.0
        %406 = vmatprep.subr.mxu0 0.0
        %407 = vmatpush2.msra.mxu0 0.0
        %408 = vmatprep.subr.mxu0 0.0
        %409 = vmatpush2.msra.mxu0 0.0
        %410 = vmatprep.subr.mxu0 0.0
        %411 = vmatpush2.msra.mxu0 0.0
        %412 = vmatprep.subr.mxu0 0.0
        %413 = vmatpush2.msra.mxu0 0.0
        %414 = vmatprep.subr.mxu0 0.0
        %415 = vmatpush2.msra.mxu0 0.0
        %416 = vmatprep.subr.mxu0 0.0
        %417 = vmatpush2.msra.mxu0 0.0
        %418 = vmatprep.subr.mxu0 0.0
        %419 = vmatpush2.msra.mxu0 0.0
        %420 = vmatprep.subr.mxu0 0.0
        %421 = vmatpush2.msra.mxu0 0.0
        %422 = vmatprep.subr.mxu0 0.0
        %423 = vmatpush2.msra.mxu0 0.0
        %424 = vmatprep.subr.mxu0 0.0
        %425 = vmatpush2.msra.mxu0 0.0
        %426 = vmatprep.subr.mxu0 0.0
        %427 = vmatpush2.msra.mxu0 0.0
        %428 = vmatprep.mubr.f32.mxu0 0.0
        %429 = vmatmul.mubr.f32.gmra.mxu0 %v328
        %v430 = vpop.f32.mrf.mxu0
        %v431 = vadd.f32 %v362, %v430
        %v432 = vpop.f32.mrf.mxu0
        %433 = vmatprep.mubr.f32.mxu0 0.0
        %434 = vmatmul.mubr.f32.gmra.mxu0 %v329
        %v435 = vpop.f32.mrf.mxu0
        %v436 = vadd.f32 %v362, %v435
        %v437 = vpop.f32.mrf.mxu0
        %438 = vmatprep.mubr.f32.mxu0 0.0
        %439 = vmatmul.mubr.f32.gmra.mxu0 %v330
        %v440 = vpop.f32.mrf.mxu0
        %v441 = vadd.f32 %v362, %v440
        %v442 = vpop.f32.mrf.mxu0
        %443 = vmatprep.mubr.f32.mxu0 0.0
        %444 = vmatmul.mubr.f32.gmra.mxu0 %v331
        %v445 = vpop.f32.mrf.mxu0
        %v446 = vadd.f32 %v362, %v445
        %v447 = vpop.f32.mrf.mxu0
        %448 = vmatprep.mubr.f32.mxu0 0.0
        %449 = vmatmul.mubr.f32.gmra.mxu0 %v332
        %v450 = vpop.f32.mrf.mxu0
        %v451 = vadd.f32 %v362, %v450
        %v452 = vpop.f32.mrf.mxu0
        %453 = vmatprep.mubr.f32.mxu0 0.0
        %454 = vmatmul.mubr.f32.gmra.mxu0 %v333
        %v455 = vpop.f32.mrf.mxu0
        %v456 = vadd.f32 %v362, %v455
        %v457 = vpop.f32.mrf.mxu0
        %458 = vmatprep.mubr.f32.mxu0 0.0
        %459 = vmatmul.mubr.f32.gmra.mxu0 %v334
        %v460 = vpop.f32.mrf.mxu0
        %v461 = vadd.f32 %v362, %v460
        %v462 = vpop.f32.mrf.mxu0
        %463 = vmatprep.mubr.f32.mxu0 0.0
        %464 = vmatmul.mubr.f32.gmra.mxu0 %v335
        %v465 = vpop.f32.mrf.mxu0
        %v466 = vadd.f32 %v362, %v465
        %v467 = vpop.f32.mrf.mxu0
        %468 = vmatprep.mubr.f32.mxu0 0.0
        %469 = vmatmul.mubr.f32.gmra.mxu0 %v336
        %v470 = vpop.f32.mrf.mxu0
        %v471 = vadd.f32 %v362, %v470
        %v472 = vpop.f32.mrf.mxu0
        %473 = vmatprep.mubr.f32.mxu0 0.0
        %474 = vmatmul.mubr.f32.gmra.mxu0 %v337
        %v475 = vpop.f32.mrf.mxu0
        %v476 = vadd.f32 %v362, %v475
        %v477 = vpop.f32.mrf.mxu0
        %478 = vmatprep.mubr.f32.mxu0 0.0
        %479 = vmatmul.mubr.f32.gmra.mxu0 %v338
        %v480 = vpop.f32.mrf.mxu0
        %v481 = vadd.f32 %v362, %v480
        %v482 = vpop.f32.mrf.mxu0
        %483 = vmatprep.mubr.f32.mxu0 0.0
        %484 = vmatmul.mubr.f32.gmra.mxu0 %v339
        %v485 = vpop.f32.mrf.mxu0
        %v486 = vadd.f32 %v362, %v485
        %v487 = vpop.f32.mrf.mxu0
        %488 = vmatprep.mubr.f32.mxu0 0.0
        %489 = vmatmul.mubr.f32.gmra.mxu0 %v340
        %v490 = vpop.f32.mrf.mxu0
        %v491 = vadd.f32 %v362, %v490
        %v492 = vpop.f32.mrf.mxu0
        %493 = vdwg.mxu0
        %v494 = vmax.f32 %v431, 0.0
        %v495 = vmax.f32 %v436, 0.0
        %v496 = vmax.f32 %v441, 0.0
        %v497 = vmax.f32 %v446, 0.0
        %v498 = vmax.f32 %v451, 0.0
        %v499 = vmax.f32 %v456, 0.0
        %v500 = vmax.f32 %v461, 0.0
        %v501 = vmax.f32 %v466, 0.0
        %v502 = vmax.f32 %v471, 0.0
        %v503 = vmax.f32 %v476, 0.0
        %v504 = vmax.f32 %v481, 0.0
        %v505 = vmax.f32 %v486, 0.0
        %v506 = vmax.f32 %v491, 0.0
        %v507 = vld [vmem:[#allocation2] sm:$0xff]
        %v508 = vld [vmem:[#allocation2 + $0x8] sm:$0xff]
        %v509 = vld [vmem:[#allocation2 + $0x10] sm:$0xff]
        %v510 = vld [vmem:[#allocation2 + $0x18] sm:$0xff]
        %v511 = vld [vmem:[#allocation2 + $0x20] sm:$0xff]
        %v512 = vld [vmem:[#allocation2 + $0x28] sm:$0xff]
        %v513 = vld [vmem:[#allocation2 + $0x30] sm:$0xff]
        %v514 = vld [vmem:[#allocation2 + $0x38] sm:$0xff]
        %v515 = vld [vmem:[#allocation2 + $0x40] sm:$0xff]
        %v516 = vld [vmem:[#allocation2 + $0x48] sm:$0xff]
        %v517 = vld [vmem:[#allocation2 + $0x50] sm:$0xff]
        %v518 = vld [vmem:[#allocation2 + $0x58] sm:$0xff]
        %v519 = vld [vmem:[#allocation2 + $0x60] sm:$0xff]
        %v520 = vld [vmem:[%s304] sm:$0xff]
        %v521 = vld [vmem:[%s304 + $0x8] sm:$0xff]
        %v522 = vld [vmem:[%s304 + $0x10] sm:$0xff]
        %v523 = vld [vmem:[%s304 + $0x18] sm:$0xff]
        %v524 = vld [vmem:[%s304 + $0x20] sm:$0xff]
        %v525 = vld [vmem:[%s304 + $0x28] sm:$0xff]
        %v526 = vld [vmem:[%s304 + $0x30] sm:$0xff]
        %v527 = vld [vmem:[%s304 + $0x38] sm:$0xff]
        %v528 = vld [vmem:[%s304 + $0x40] sm:$0xff]
        %v529 = vld [vmem:[%s304 + $0x48] sm:$0xff]
        %v530 = vld [vmem:[%s304 + $0x50] sm:$0xff]
        %v531 = vld [vmem:[%s304 + $0x58] sm:$0xff]
        %v532 = vld [vmem:[%s304 + $0x60] sm:$0xff]
        %v533 = vld [vmem:[%s304 + $0x68] sm:$0xff]
        %v534 = vld [vmem:[%s304 + $0x70] sm:$0xff]
        %v535 = vld [vmem:[%s304 + $0x78] sm:$0xff]
        %536 = vmatprep.subr.mxu0 0.0
        %537 = vmatpush1.msra.mxu0 %v535
        %538 = vmatprep.subr.mxu0 0.0
        %539 = vmatpush1.msra.mxu0 %v534
        %540 = vmatprep.subr.mxu0 0.0
        %541 = vmatpush1.msra.mxu0 %v533
        %542 = vmatprep.subr.mxu0 0.0
        %543 = vmatpush1.msra.mxu0 %v532
        %544 = vmatprep.subr.mxu0 0.0
        %545 = vmatpush1.msra.mxu0 %v531
        %546 = vmatprep.subr.mxu0 0.0
        %547 = vmatpush1.msra.mxu0 %v530
        %548 = vmatprep.subr.mxu0 0.0
        %549 = vmatpush1.msra.mxu0 %v529
        %550 = vmatprep.subr.mxu0 0.0
        %551 = vmatpush1.msra.mxu0 %v528
        %552 = vmatprep.subr.mxu0 0.0
        %553 = vmatpush1.msra.mxu0 %v527
        %554 = vmatprep.subr.mxu0 0.0
        %555 = vmatpush1.msra.mxu0 %v526
        %556 = vmatprep.subr.mxu0 0.0
        %557 = vmatpush1.msra.mxu0 %v525
        %558 = vmatprep.subr.mxu0 0.0
        %559 = vmatpush1.msra.mxu0 %v524
        %560 = vmatprep.subr.mxu0 0.0
        %561 = vmatpush1.msra.mxu0 %v523
        %562 = vmatprep.subr.mxu0 0.0
        %563 = vmatpush1.msra.mxu0 %v522
        %564 = vmatprep.subr.mxu0 0.0
        %565 = vmatpush1.msra.mxu0 %v521
        %566 = vmatprep.subr.mxu0 0.0
        %567 = vmatpush1.msra.mxu0 %v520
        %568 = vmatprep.subr.mxu0 0.0
        %569 = vmatpush2.msra.mxu0 0.0
        %570 = vmatprep.subr.mxu0 0.0
        %571 = vmatpush2.msra.mxu0 0.0
        %572 = vmatprep.subr.mxu0 0.0
        %573 = vmatpush2.msra.mxu0 0.0
        %574 = vmatprep.subr.mxu0 0.0
        %575 = vmatpush2.msra.mxu0 0.0
        %576 = vmatprep.subr.mxu0 0.0
        %577 = vmatpush2.msra.mxu0 0.0
        %578 = vmatprep.subr.mxu0 0.0
        %579 = vmatpush2.msra.mxu0 0.0
        %580 = vmatprep.subr.mxu0 0.0
        %581 = vmatpush2.msra.mxu0 0.0
        %582 = vmatprep.subr.mxu0 0.0
        %583 = vmatpush2.msra.mxu0 0.0
        %584 = vmatprep.subr.mxu0 0.0
        %585 = vmatpush2.msra.mxu0 0.0
        %586 = vmatprep.subr.mxu0 0.0
        %587 = vmatpush2.msra.mxu0 0.0
        %588 = vmatprep.subr.mxu0 0.0
        %589 = vmatpush2.msra.mxu0 0.0
        %590 = vmatprep.subr.mxu0 0.0
        %591 = vmatpush2.msra.mxu0 0.0
        %592 = vmatprep.subr.mxu0 0.0
        %593 = vmatpush2.msra.mxu0 0.0
        %594 = vmatprep.subr.mxu0 0.0
        %595 = vmatpush2.msra.mxu0 0.0
        %596 = vmatprep.subr.mxu0 0.0
        %597 = vmatpush2.msra.mxu0 0.0
        %598 = vmatprep.subr.mxu0 0.0
        %599 = vmatpush2.msra.mxu0 0.0
        %600 = vmatprep.mubr.f32.mxu0 0.0
        %601 = vmatmul.mubr.f32.gmra.mxu0 %v494
        %v602 = vpop.f32.mrf.mxu0
        %v603 = vadd.f32 0.0, %v602
        %v604 = vpop.f32.mrf.mxu0
        %605 = vmatprep.mubr.f32.mxu0 0.0
        %606 = vmatmul.mubr.f32.gmra.mxu0 %v495
        %v607 = vpop.f32.mrf.mxu0
        %v608 = vadd.f32 0.0, %v607
        %v609 = vpop.f32.mrf.mxu0
        %610 = vmatprep.mubr.f32.mxu0 0.0
        %611 = vmatmul.mubr.f32.gmra.mxu0 %v496
        %v612 = vpop.f32.mrf.mxu0
        %v613 = vadd.f32 0.0, %v612
        %v614 = vpop.f32.mrf.mxu0
        %615 = vmatprep.mubr.f32.mxu0 0.0
        %616 = vmatmul.mubr.f32.gmra.mxu0 %v497
        %v617 = vpop.f32.mrf.mxu0
        %v618 = vadd.f32 0.0, %v617
        %v619 = vpop.f32.mrf.mxu0
        %620 = vmatprep.mubr.f32.mxu0 0.0
        %621 = vmatmul.mubr.f32.gmra.mxu0 %v498
        %v622 = vpop.f32.mrf.mxu0
        %v623 = vadd.f32 0.0, %v622
        %v624 = vpop.f32.mrf.mxu0
        %625 = vmatprep.mubr.f32.mxu0 0.0
        %626 = vmatmul.mubr.f32.gmra.mxu0 %v499
        %v627 = vpop.f32.mrf.mxu0
        %v628 = vadd.f32 0.0, %v627
        %v629 = vpop.f32.mrf.mxu0
        %630 = vmatprep.mubr.f32.mxu0 0.0
        %631 = vmatmul.mubr.f32.gmra.mxu0 %v500
        %v632 = vpop.f32.mrf.mxu0
        %v633 = vadd.f32 0.0, %v632
        %v634 = vpop.f32.mrf.mxu0
        %635 = vmatprep.mubr.f32.mxu0 0.0
        %636 = vmatmul.mubr.f32.gmra.mxu0 %v501
        %v637 = vpop.f32.mrf.mxu0
        %v638 = vadd.f32 0.0, %v637
        %v639 = vpop.f32.mrf.mxu0
        %640 = vmatprep.mubr.f32.mxu0 0.0
        %641 = vmatmul.mubr.f32.gmra.mxu0 %v502
        %v642 = vpop.f32.mrf.mxu0
        %v643 = vadd.f32 0.0, %v642
        %v644 = vpop.f32.mrf.mxu0
        %645 = vmatprep.mubr.f32.mxu0 0.0
        %646 = vmatmul.mubr.f32.gmra.mxu0 %v503
        %v647 = vpop.f32.mrf.mxu0
        %v648 = vadd.f32 0.0, %v647
        %v649 = vpop.f32.mrf.mxu0
        %650 = vmatprep.mubr.f32.mxu0 0.0
        %651 = vmatmul.mubr.f32.gmra.mxu0 %v504
        %v652 = vpop.f32.mrf.mxu0
        %v653 = vadd.f32 0.0, %v652
        %v654 = vpop.f32.mrf.mxu0
        %655 = vmatprep.mubr.f32.mxu0 0.0
        %656 = vmatmul.mubr.f32.gmra.mxu0 %v505
        %v657 = vpop.f32.mrf.mxu0
        %v658 = vadd.f32 0.0, %v657
        %v659 = vpop.f32.mrf.mxu0
        %660 = vmatprep.mubr.f32.mxu0 0.0
        %661 = vmatmul.mubr.f32.gmra.mxu0 %v506
        %v662 = vpop.f32.mrf.mxu0
        %v663 = vadd.f32 0.0, %v662
        %v664 = vpop.f32.mrf.mxu0
        %665 = vdwg.mxu0
        %v666 = vadd.f32 %v507, %v603
        %v667 = vadd.f32 %v508, %v608
        %v668 = vadd.f32 %v509, %v613
        %v669 = vadd.f32 %v510, %v618
        %v670 = vadd.f32 %v511, %v623
        %v671 = vadd.f32 %v512, %v628
        %v672 = vadd.f32 %v513, %v633
        %v673 = vadd.f32 %v514, %v638
        %v674 = vadd.f32 %v515, %v643
        %v675 = vadd.f32 %v516, %v648
        %v676 = vadd.f32 %v517, %v653
        %v677 = vadd.f32 %v518, %v658
        %v678 = vadd.f32 %v519, %v663
        %679 = vst [vmem:[#allocation2] sm:$0xff] %v666
        %680 = vst [vmem:[#allocation2 + $0x8] sm:$0xff] %v667
        %681 = vst [vmem:[#allocation2 + $0x10] sm:$0xff] %v668
        %682 = vst [vmem:[#allocation2 + $0x18] sm:$0xff] %v669
        %683 = vst [vmem:[#allocation2 + $0x20] sm:$0xff] %v670
        %684 = vst [vmem:[#allocation2 + $0x28] sm:$0xff] %v671
        %685 = vst [vmem:[#allocation2 + $0x30] sm:$0xff] %v672
        %686 = vst [vmem:[#allocation2 + $0x38] sm:$0xff] %v673
        %687 = vst [vmem:[#allocation2 + $0x40] sm:$0xff] %v674
        %688 = vst [vmem:[#allocation2 + $0x48] sm:$0xff] %v675
        %689 = vst [vmem:[#allocation2 + $0x50] sm:$0xff] %v676
        %690 = vst [vmem:[#allocation2 + $0x58] sm:$0xff] %v677
        %691 = vst [vmem:[#allocation2 + $0x60] sm:$0xff] %v678
        // Predicated region
        $region45: #{_mlp_forward_padded.1} parent=39 // pred_check
          %p692 = pneg %p311
        $region46: #{_mlp_forward_padded.1} parent=39 // pred_check_branch
          %694 = sbr.rel (%p692) target = $region48
        $region47: #{_mlp_forward_padded.1} parent=39 // pred_region
          %v695 = vld [vmem:[#allocation2] sm:$0xff]
          %v696 = vld [vmem:[#allocation2 + $0x8] sm:$0xff]
          %v697 = vld [vmem:[#allocation2 + $0x10] sm:$0xff]
          %v698 = vld [vmem:[#allocation2 + $0x18] sm:$0xff]
          %v699 = vld [vmem:[#allocation2 + $0x20] sm:$0xff]
          %v700 = vld [vmem:[#allocation2 + $0x28] sm:$0xff]
          %v701 = vld [vmem:[#allocation2 + $0x30] sm:$0xff]
          %v702 = vld [vmem:[#allocation2 + $0x38] sm:$0xff]
          %v703 = vld [vmem:[#allocation2 + $0x40] sm:$0xff]
          %v704 = vld [vmem:[#allocation2 + $0x48] sm:$0xff]
          %v705 = vld [vmem:[#allocation2 + $0x50] sm:$0xff]
          %v706 = vld [vmem:[#allocation2 + $0x58] sm:$0xff]
          %v707 = vld [vmem:[#allocation2 + $0x60] sm:$0xff]
          %v708 = vld [vmem:[%s4] sm:$0x1]
          %v710 = vlaneseq
          %v711 = vshrl.u32 %v710, 7
          %v712 = vsub.s32 0, %v711
          %v713 = vrot.slane %v708, %v712
          %v715 = vadd.f32 %v695, %v713
          %v716 = vadd.f32 %v696, %v713
          %v717 = vadd.f32 %v697, %v713
          %v718 = vadd.f32 %v698, %v713
          %v719 = vadd.f32 %v699, %v713
          %v720 = vadd.f32 %v700, %v713
          %v721 = vadd.f32 %v701, %v713
          %v722 = vadd.f32 %v702, %v713
          %v723 = vadd.f32 %v703, %v713
          %v724 = vadd.f32 %v704, %v713
          %v725 = vadd.f32 %v705, %v713
          %v726 = vadd.f32 %v706, %v713
          %v727 = vadd.f32 %v707, %v713
          %v728 = vmax.f32 %v715, 0.0
          %v729 = vmax.f32 %v716, 0.0
          %v730 = vmax.f32 %v717, 0.0
          %v731 = vmax.f32 %v718, 0.0
          %v732 = vmax.f32 %v719, 0.0
          %v733 = vmax.f32 %v720, 0.0
          %v734 = vmax.f32 %v721, 0.0
          %v735 = vmax.f32 %v722, 0.0
          %v736 = vmax.f32 %v723, 0.0
          %v737 = vmax.f32 %v724, 0.0
          %v738 = vmax.f32 %v725, 0.0
          %v739 = vmax.f32 %v726, 0.0
          %v740 = vmax.f32 %v727, 0.0
          %741 = vst [vmem:[%s278] sm:$0xff] %v728
          %742 = vst [vmem:[%s278 + $0x8] sm:$0xff] %v729
          %743 = vst [vmem:[%s278 + $0x10] sm:$0xff] %v730
          %744 = vst [vmem:[%s278 + $0x18] sm:$0xff] %v731
          %745 = vst [vmem:[%s278 + $0x20] sm:$0xff] %v732
          %746 = vst [vmem:[%s278 + $0x28] sm:$0xff] %v733
          %747 = vst [vmem:[%s278 + $0x30] sm:$0xff] %v734
          %748 = vst [vmem:[%s278 + $0x38] sm:$0xff] %v735
          %749 = vst [vmem:[%s278 + $0x40] sm:$0xff] %v736
          %750 = vst [vmem:[%s278 + $0x48] sm:$0xff] %v737
          %751 = vst [vmem:[%s278 + $0x50] sm:$0xff] %v738
          %752 = vst [vmem:[%s278 + $0x58] sm:$0xff] %v739
          %753 = vst [vmem:[%s278 + $0x60] sm:$0xff] %v740
        $region48: #{_mlp_forward_padded.1} parent=39 // pred_fallthru
          _
        %s754 = sand.u32 %s161, 1
        %s755 = sand.u32 %s161, 1
        %s756 = smul.addr %s755, 104
        %s757 = scalar_lea.vmem [#allocation3], %s756
        // Predicated region
        $region49: #{_mlp_forward_padded.1} parent=39 // pred_check
          %p758 = pneg %p171
        $region50: #{_mlp_forward_padded.1} parent=39 // pred_check_branch
          %760 = sbr.rel (%p758) target = $region52
        $region51: #{_mlp_forward_padded.1} parent=39 // pred_region
          %s761 = smul.u32 13, %s20
          %s762 = ssub.s32 25, %s761
          %p763 = scmp.lt.s32.totalorder %s762, 13
          %s764 = scalar_select %p763, %s762, 13
          %s765 = smul.u32 128, %s764
          %p766 = scmp.ne.s32.totalorder 0, %s765
          %s767 = smul.addr %s761, 8
          %s768 = scalar_lea.vmem %s5, %s767
          // Predicated region
          $region53: #{_mlp_forward_padded.1} parent=51 // pred_check
            %p769 = pneg %p766
          $region54: #{_mlp_forward_padded.1} parent=51 // pred_check_branch
            %771 = sbr.rel (%p769) target = $region56
          $region55: #{_mlp_forward_padded.1} parent=51 // pred_region
            // Predicated region
            $region57: #{_mlp_forward_padded.1} parent=55 // pred_check
              _
            $region58: #{_mlp_forward_padded.1} parent=55 // pred_check_branch
              %773 = sbr.rel (0) target = $region60
            $region59: #{_mlp_forward_padded.1} parent=55 // pred_region
              // Predicated region
              $region79: #{_mlp_forward_padded.1} parent=59 // pred_check
                _
              $region80: #{_mlp_forward_padded.1} parent=59 // pred_check_branch
                %848 = sbr.rel (0) target = $region82
              $region81: #{_mlp_forward_padded.1} parent=59 // pred_region
                %s849 = sdiv.u32.pop %s764, 13
                %s850 = srem.u32.pop %s764, 13
                // While loop
                $region83: #{_mlp_forward_padded.1} parent=81 // loop_pre_header
                  _
                $region84: #{_mlp_forward_padded.1} parent=81 // loop_header
                  %s852 = sphi 0, %s854
                  %p853 = scmp.ge.s32.totalorder %s852, %s849
                  %s857 = sphi 0, %s888
                  %s858 = sphi %s757, %s891
                  %s859 = sphi %s768, %s892
                $region85: #{_mlp_forward_padded.1} parent=81 // loop_header_branch
                  %856 = sbr.rel (%p853) target = $region89
                $region86: #{_mlp_forward_padded.1} parent=81 // loop_body
                  %v860 = vld [vmem:[%s858] sm:$0xff]
                  %861 = vst [vmem:[%s859] sm:$0xff] %v860
                  %v862 = vld [vmem:[%s858 + $0x8] sm:$0xff]
                  %863 = vst [vmem:[%s859 + $0x8] sm:$0xff] %v862
                  %v864 = vld [vmem:[%s858 + $0x10] sm:$0xff]
                  %865 = vst [vmem:[%s859 + $0x10] sm:$0xff] %v864
                  %v866 = vld [vmem:[%s858 + $0x18] sm:$0xff]
                  %867 = vst [vmem:[%s859 + $0x18] sm:$0xff] %v866
                  %v868 = vld [vmem:[%s858 + $0x20] sm:$0xff]
                  %869 = vst [vmem:[%s859 + $0x20] sm:$0xff] %v868
                  %v870 = vld [vmem:[%s858 + $0x28] sm:$0xff]
                  %871 = vst [vmem:[%s859 + $0x28] sm:$0xff] %v870
                  %v872 = vld [vmem:[%s858 + $0x30] sm:$0xff]
                  %873 = vst [vmem:[%s859 + $0x30] sm:$0xff] %v872
                  %v874 = vld [vmem:[%s858 + $0x38] sm:$0xff]
                  %875 = vst [vmem:[%s859 + $0x38] sm:$0xff] %v874
                  %v876 = vld [vmem:[%s858 + $0x40] sm:$0xff]
                  %877 = vst [vmem:[%s859 + $0x40] sm:$0xff] %v876
                  %v878 = vld [vmem:[%s858 + $0x48] sm:$0xff]
                  %879 = vst [vmem:[%s859 + $0x48] sm:$0xff] %v878
                  %v880 = vld [vmem:[%s858 + $0x50] sm:$0xff]
                  %881 = vst [vmem:[%s859 + $0x50] sm:$0xff] %v880
                  %v882 = vld [vmem:[%s858 + $0x58] sm:$0xff]
                  %883 = vst [vmem:[%s859 + $0x58] sm:$0xff] %v882
                  %v884 = vld [vmem:[%s858 + $0x60] sm:$0xff]
                  %885 = vst [vmem:[%s859 + $0x60] sm:$0xff] %v884
                  %s886 = sadd.s32 1, %s857
                  %p887 = scmp.ge.s32.totalorder %s886, %s849
                  %s888 = scalar_select %p887, 0, %s886
                  %s889 = smul.u32 %s888, 104
                  %s890 = smul.u32 %s888, 104
                  %s891 = scalar_lea.vmem %s757, %s889 [#allocation3]
                  %s892 = scalar_lea.vmem %s768, %s890
                $region87: #{_mlp_forward_padded.1} parent=81 // loop_footer
                  %s854 = sadd.s32 %s852, 1
                $region88: #{_mlp_forward_padded.1} parent=81 // loop_footer_branch
                  %851 = sbr.rel target = $region84
                $region89: #{_mlp_forward_padded.1} parent=81 // loop_exit
                  _
                %s893 = sdiv.u32.pop %s764, 13
                %s894 = srem.u32.pop %s764, 13
                %s895 = smul.u32 %s893, 13
                %s896 = smul.u32 8, %s895
                %s897 = scalar_lea.vmem %s757, %s896 [#allocation3]
                %s898 = smul.u32 8, %s895
                %s899 = scalar_lea.vmem %s768, %s898
                // While loop
                $region90: #{_mlp_forward_padded.1} parent=81 // loop_pre_header
                  _
                $region91: #{_mlp_forward_padded.1} parent=81 // loop_header
                  %s901 = sphi 0, %s903
                  %p902 = scmp.ge.s32.totalorder %s901, %s894
                  %s906 = sphi 0, %s913
                  %s907 = sphi %s897, %s916
                  %s908 = sphi %s899, %s917
                $region92: #{_mlp_forward_padded.1} parent=81 // loop_header_branch
                  %905 = sbr.rel (%p902) target = $region96
                $region93: #{_mlp_forward_padded.1} parent=81 // loop_body
                  %v909 = vld [vmem:[%s907] sm:$0xff]
                  %910 = vst [vmem:[%s908] sm:$0xff] %v909
                  %s911 = sadd.s32 1, %s906
                  %p912 = scmp.ge.s32.totalorder %s911, %s894
                  %s913 = scalar_select %p912, 0, %s911
                  %s914 = smul.u32 %s913, 8
                  %s915 = smul.u32 %s913, 8
                  %s916 = scalar_lea.vmem %s897, %s914 [#allocation3]
                  %s917 = scalar_lea.vmem %s899, %s915
                $region94: #{_mlp_forward_padded.1} parent=81 // loop_footer
                  %s903 = sadd.s32 %s901, 1
                $region95: #{_mlp_forward_padded.1} parent=81 // loop_footer_branch
                  %900 = sbr.rel target = $region91
                $region96: #{_mlp_forward_padded.1} parent=81 // loop_exit
                  _
              $region82: #{_mlp_forward_padded.1} parent=59 // pred_fallthru
                _
              // Predicated region
              $region97: #{_mlp_forward_padded.1} parent=59 // pred_check
                _
              $region98: #{_mlp_forward_padded.1} parent=59 // pred_check_branch
                %919 = sbr.rel target = $region100
              $region99: #{_mlp_forward_padded.1} parent=59 // pred_region
                _
              $region100: #{_mlp_forward_padded.1} parent=59 // pred_fallthru
                _
            $region60: #{_mlp_forward_padded.1} parent=55 // pred_fallthru
              _
            // Predicated region
            $region61: #{_mlp_forward_padded.1} parent=55 // pred_check
              _
            $region62: #{_mlp_forward_padded.1} parent=55 // pred_check_branch
              %775 = sbr.rel target = $region64
            $region63: #{_mlp_forward_padded.1} parent=55 // pred_region
              %s777 = ssub.s32 256, 1
              %s778 = sdiv.u32.pop %s764, 13
              %s779 = srem.u32.pop %s764, 13
              // While loop
              $region65: #{_mlp_forward_padded.1} parent=63 // loop_pre_header
                _
              $region66: #{_mlp_forward_padded.1} parent=63 // loop_header
                %s781 = sphi 0, %s783
                %p782 = scmp.ge.s32.totalorder %s781, %s778
                %s786 = sphi 0, %s817
                %s787 = sphi %s757, %s820
                %s788 = sphi %s768, %s821
              $region67: #{_mlp_forward_padded.1} parent=63 // loop_header_branch
                %785 = sbr.rel (%p782) target = $region71
              $region68: #{_mlp_forward_padded.1} parent=63 // loop_body
                %v789 = vld [vmem:[%s787] sm:%s777]
                %790 = vst [vmem:[%s788] sm:%s777] %v789
                %v791 = vld [vmem:[%s787 + $0x8] sm:%s777]
                %792 = vst [vmem:[%s788 + $0x8] sm:%s777] %v791
                %v793 = vld [vmem:[%s787 + $0x10] sm:%s777]
                %794 = vst [vmem:[%s788 + $0x10] sm:%s777] %v793
                %v795 = vld [vmem:[%s787 + $0x18] sm:%s777]
                %796 = vst [vmem:[%s788 + $0x18] sm:%s777] %v795
                %v797 = vld [vmem:[%s787 + $0x20] sm:%s777]
                %798 = vst [vmem:[%s788 + $0x20] sm:%s777] %v797
                %v799 = vld [vmem:[%s787 + $0x28] sm:%s777]
                %800 = vst [vmem:[%s788 + $0x28] sm:%s777] %v799
                %v801 = vld [vmem:[%s787 + $0x30] sm:%s777]
                %802 = vst [vmem:[%s788 + $0x30] sm:%s777] %v801
                %v803 = vld [vmem:[%s787 + $0x38] sm:%s777]
                %804 = vst [vmem:[%s788 + $0x38] sm:%s777] %v803
                %v805 = vld [vmem:[%s787 + $0x40] sm:%s777]
                %806 = vst [vmem:[%s788 + $0x40] sm:%s777] %v805
                %v807 = vld [vmem:[%s787 + $0x48] sm:%s777]
                %808 = vst [vmem:[%s788 + $0x48] sm:%s777] %v807
                %v809 = vld [vmem:[%s787 + $0x50] sm:%s777]
                %810 = vst [vmem:[%s788 + $0x50] sm:%s777] %v809
                %v811 = vld [vmem:[%s787 + $0x58] sm:%s777]
                %812 = vst [vmem:[%s788 + $0x58] sm:%s777] %v811
                %v813 = vld [vmem:[%s787 + $0x60] sm:%s777]
                %814 = vst [vmem:[%s788 + $0x60] sm:%s777] %v813
                %s815 = sadd.s32 1, %s786
                %p816 = scmp.ge.s32.totalorder %s815, %s778
                %s817 = scalar_select %p816, 0, %s815
                %s818 = smul.u32 %s817, 104
                %s819 = smul.u32 %s817, 104
                %s820 = scalar_lea.vmem %s757, %s818 [#allocation3]
                %s821 = scalar_lea.vmem %s768, %s819
              $region69: #{_mlp_forward_padded.1} parent=63 // loop_footer
                %s783 = sadd.s32 %s781, 1
              $region70: #{_mlp_forward_padded.1} parent=63 // loop_footer_branch
                %780 = sbr.rel target = $region66
              $region71: #{_mlp_forward_padded.1} parent=63 // loop_exit
                _
              %s822 = sdiv.u32.pop %s764, 13
              %s823 = srem.u32.pop %s764, 13
              %s824 = smul.u32 %s822, 13
              %s825 = smul.u32 8, %s824
              %s826 = scalar_lea.vmem %s757, %s825 [#allocation3]
              %s827 = smul.u32 8, %s824
              %s828 = scalar_lea.vmem %s768, %s827
              // While loop
              $region72: #{_mlp_forward_padded.1} parent=63 // loop_pre_header
                _
              $region73: #{_mlp_forward_padded.1} parent=63 // loop_header
                %s830 = sphi 0, %s832
                %p831 = scmp.ge.s32.totalorder %s830, %s823
                %s835 = sphi 0, %s842
                %s836 = sphi %s826, %s845
                %s837 = sphi %s828, %s846
              $region74: #{_mlp_forward_padded.1} parent=63 // loop_header_branch
                %834 = sbr.rel (%p831) target = $region78
              $region75: #{_mlp_forward_padded.1} parent=63 // loop_body
                %v838 = vld [vmem:[%s836] sm:%s777]
                %839 = vst [vmem:[%s837] sm:%s777] %v838
                %s840 = sadd.s32 1, %s835
                %p841 = scmp.ge.s32.totalorder %s840, %s823
                %s842 = scalar_select %p841, 0, %s840
                %s843 = smul.u32 %s842, 8
                %s844 = smul.u32 %s842, 8
                %s845 = scalar_lea.vmem %s826, %s843 [#allocation3]
                %s846 = scalar_lea.vmem %s828, %s844
              $region76: #{_mlp_forward_padded.1} parent=63 // loop_footer
                %s832 = sadd.s32 %s830, 1
              $region77: #{_mlp_forward_padded.1} parent=63 // loop_footer_branch
                %829 = sbr.rel target = $region73
              $region78: #{_mlp_forward_padded.1} parent=63 // loop_exit
                _
            $region64: #{_mlp_forward_padded.1} parent=55 // pred_fallthru
              _
          $region56: #{_mlp_forward_padded.1} parent=51 // pred_fallthru
            _
          %920 = vnop
        $region52: #{_mlp_forward_padded.1} parent=39 // pred_fallthru
          _
      $region40: #{_mlp_forward_padded.1} parent=5 // pred_fallthru
        _
      %p921 = scmp.le.s32.totalorder 2, %s11
      // Predicated region
      $region101: #{_mlp_forward_padded.1} parent=5 // pred_check
        %p922 = pneg %p921
      $region102: #{_mlp_forward_padded.1} parent=5 // pred_check_branch
        %924 = sbr.rel (%p922) target = $region104
      $region103: #{_mlp_forward_padded.1} parent=5 // pred_region
        %s925 = ssub.s32 %s11, 2
        // Predicated region
        $region105: #{_mlp_forward_padded.1} parent=103 // pred_check
          %p926 = pneg %p177
        $region106: #{_mlp_forward_padded.1} parent=103 // pred_check_branch
          %928 = sbr.rel (%p926) target = $region108
        $region107: #{_mlp_forward_padded.1} parent=103 // pred_region
          %s929 = sand.u32 %s162, 1
          %s930 = sand.u32 %s162, 1
          %s931 = smul.addr %s930, 104
          %s932 = scalar_lea.vmem [#allocation3], %s931
        $region108: #{_mlp_forward_padded.1} parent=103 // pred_fallthru
          _
      $region104: #{_mlp_forward_padded.1} parent=5 // pred_fallthru
        _
    $region6: #{_mlp_forward_padded.1} parent=1 // loop_footer
      %s15 = sadd.s32 1, %s11
    $region7: #{_mlp_forward_padded.1} parent=1 // loop_footer_branch
      %10 = sbr.rel target = $region3
    $region8: #{_mlp_forward_padded.1} parent=1 // loop_exit
      _

</llo_original>
